<compile_context>
chip_gen: v7x
topology: tpu7x:2x2x1
jax: 0.10.0
libtpu: 0.0.40
codegen_flags: <defaults>
</compile_context>

<pallas_src>
import jax
import jax.numpy as jnp
from jax import lax
from jax.experimental import pallas as pl
from jax.experimental.pallas import tpu as pltpu


_MAX_BLOCK_BATCH = 8
_VMEM_LIMIT_BYTES = 48 * 1024 * 1024    # < v7x 64 MiB physical, << v5e/v6e 128 MiB
_VMEM_BUDGET_BYTES = 24 * 1024 * 1024   # tile-sizing budget, computed on padded shapes


def _pad8(x: int) -> int:
    return -(-x // 8) * 8


def _pad128(x: int) -> int:
    return -(-x // 128) * 128


def _pick_block_batch(batch: int, max_bb: int = _MAX_BLOCK_BATCH) -> int:
    """Largest divisor of `batch` <= max_bb leaving >= 4 grid steps when possible
    (>= 2 steps per TensorCore on v7x, so DMA double-buffering has work to hide)."""
    cap = max(1, min(max_bb, batch // 4)) if batch >= 4 else 1
    bb = 1
    for cand in range(2, cap + 1):
        if batch % cand == 0:
            bb = cand
    return bb


def _pick_s_tile(s: int, bb: int, d: int, o: int,
                 budget: int = _VMEM_BUDGET_BYTES) -> int:
    """S-reduction tile (lane dim) for the normal-equations path."""
    def blk_bytes(ts):
        # double-buffered rt + yt input blocks, f32, padded to (8,128) tiles
        return 2 * bb * (_pad8(d) + _pad8(o)) * _pad128(ts) * 4
    if blk_bytes(s) <= budget:
        return s
    divs = [ts for ts in range(128, s, 128) if s % ts == 0]
    good = [ts for ts in divs if blk_bytes(ts) <= budget]
    if good:
        return max(good)
    return divs[0] if divs else s


def _pick_d_tile(d: int, bb: int, s: int,
                 budget: int = _VMEM_BUDGET_BYTES) -> int:
    """D-reduction tile (sublane dim) for the sample-gram path."""
    def blk_bytes(td):
        return 2 * bb * _pad8(td) * _pad128(s) * 4
    if blk_bytes(d) <= budget:
        return d
    divs = [td for td in range(8, d, 8) if d % td == 0]
    good = [td for td in divs if blk_bytes(td) <= budget]
    if good:
        return max(good)
    return divs[0] if divs else d


# ----------------------------------------------------------------------------
# Kernels (one grid step processes BB batch elements and one reduction tile)
# ----------------------------------------------------------------------------
def _normal_eq_kernel(reg_ref, rt_ref, yt_ref, out_ref):
    """n_samples >= n_dim branch.  Produces the fused slab
       [A | B] = [X_aug'X_aug + reg*I | X_aug'Y], accumulated over S tiles."""
    k = pl.program_id(1)
    rt = rt_ref[...]                                   # (bb, d, ts)  S on lanes
    yt = yt_ref[...]                                   # (bb, o, ts)
    bb, d, ts = rt.shape
    o = yt.shape[1]
    d1 = d + 1

    ones = jnp.ones((bb, 1, ts), jnp.float32)
    rta = jnp.concatenate([rt, ones], axis=1)          # (bb, d1, ts)  X_aug'
    m = jnp.concatenate([rta, yt], axis=1)             # (bb, d1+o, ts)
    # One MXU pass: slab[:, :, :d1] = X_aug'X_aug, slab[:, :, d1:] = X_aug'Y.
    slab = jnp.einsum('bis,bjs->bij', rta, m,
                      preferred_element_type=jnp.float32)   # (bb, d1, d1+o)

    @pl.when(k == 0)
    def _():
        reg = reg_ref[0]
        row = lax.broadcasted_iota(jnp.int32, (d1, d1 + o), 0)
        col = lax.broadcasted_iota(jnp.int32, (d1, d1 + o), 1)
        seed = (row == col).astype(jnp.float32) * reg       # reg*I in the A block
        out_ref[...] = jnp.broadcast_to(seed[None], (bb, d1, d1 + o))

    out_ref[...] += slab                                    # single full-block store


def _sample_gram_kernel(reg_ref, rt_ref, g_ref):
    """n_samples < n_dim branch, step 1:
       G = X_aug X_aug' + reg*I = R R' + 1*1' + reg*I, accumulated over D tiles."""
    k = pl.program_id(1)
    rt = rt_ref[...]                                   # (bb, td, s)
    bb, td, s = rt.shape
    partial = jnp.einsum('bds,bdt->bst', rt, rt,
                         preferred_element_type=jnp.float32)  # (bb, s, s)

    @pl.when(k == 0)
    def _():
        reg = reg_ref[0]
        row = lax.broadcasted_iota(jnp.int32, (s, s), 0)
        col = lax.broadcasted_iota(jnp.int32, (s, s), 1)
        base = 1.0 + (row == col).astype(jnp.float32) * reg  # ones outer + reg*I
        g_ref[...] = jnp.broadcast_to(base[None], (bb, s, s))

    g_ref[...] += partial


def _xt_matmul_kernel(rt_ref, zt_ref, w_ref):
    """n_samples < n_dim branch, step 2:  W_aug = X_aug' Z = [[R'Z], [1'Z]]."""
    rt = rt_ref[...]                                   # (bb, d, s)
    zt = zt_ref[...]                                   # (bb, o, s)
    bb, d, s = rt.shape
    ones = jnp.ones((bb, 1, s), jnp.float32)
    rta = jnp.concatenate([rt, ones], axis=1)          # (bb, d1, s)
    w_ref[...] = jnp.einsum('bds,bos->bdo', rta, zt,
                            preferred_element_type=jnp.float32)


# ----------------------------------------------------------------------------
# pallas_call wrappers
# ----------------------------------------------------------------------------
def _normal_equations(rt, yt, reg, bb):
    b, d, s = rt.shape
    o = yt.shape[1]
    d1 = d + 1
    nb = b // bb
    ts = _pick_s_tile(s, bb, d, o)
    nk = s // ts
    grid_spec = pltpu.PrefetchScalarGridSpec(
        num_scalar_prefetch=1,                 # reg -> SMEM, no per-step DMA
        grid=(nb, nk),
        in_specs=[pl.BlockSpec((bb, d, ts), lambda i, k, reg_ref: (i, 0, k)),
                  pl.BlockSpec((bb, o, ts), lambda i, k, reg_ref: (i, 0, k))],
        out_specs=pl.BlockSpec((bb, d1, d1 + o), lambda i, k, reg_ref: (i, 0, 0)),
    )
    return pl.pallas_call(
        _normal_eq_kernel,
        out_shape=jax.ShapeDtypeStruct((b, d1, d1 + o), jnp.float32),
        grid_spec=grid_spec,
        compiler_params=pltpu.CompilerParams(
            dimension_semantics=("parallel", "arbitrary"),
            vmem_limit_bytes=_VMEM_LIMIT_BYTES),
    )(reg, rt, yt)


def _sample_gram(rt, reg, bb):
    b, d, s = rt.shape
    nb = b // bb
    td = _pick_d_tile(d, bb, s)
    nk = d // td
    grid_spec = pltpu.PrefetchScalarGridSpec(
        num_scalar_prefetch=1,
        grid=(nb, nk),
        in_specs=[pl.BlockSpec((bb, td, s), lambda i, k, reg_ref: (i, k, 0))],
        out_specs=pl.BlockSpec((bb, s, s), lambda i, k, reg_ref: (i, 0, 0)),
    )
    return pl.pallas_call(
        _sample_gram_kernel,
        out_shape=jax.ShapeDtypeStruct((b, s, s), jnp.float32),
        grid_spec=grid_spec,
        compiler_params=pltpu.CompilerParams(
            dimension_semantics=("parallel", "arbitrary"),
            vmem_limit_bytes=_VMEM_LIMIT_BYTES),
    )(reg, rt)


def _xt_matmul(rt, zt, bb):
    b, d, s = rt.shape
    o = zt.shape[1]
    nb = b // bb
    return pl.pallas_call(
        _xt_matmul_kernel,
        out_shape=jax.ShapeDtypeStruct((b, d + 1, o), jnp.float32),
        grid=(nb,),
        in_specs=[pl.BlockSpec((bb, d, s), lambda i: (i, 0, 0)),
                  pl.BlockSpec((bb, o, s), lambda i: (i, 0, 0))],
        out_specs=pl.BlockSpec((bb, d + 1, o), lambda i: (i, 0, 0)),
        compiler_params=pltpu.CompilerParams(
            dimension_semantics=("parallel",),
            vmem_limit_bytes=_VMEM_LIMIT_BYTES),
    )(rt, zt)


def _solve(a, rhs, reg):
    """Batched SPD solve: Cholesky when reg is clearly positive, general
    solve otherwise (avoids NaNs for reg~0 / non-PD normal equations)."""
    # TODO(synk): no Pallas primitive for dense Cholesky / triangular / LU
    #             solve; this stays in XLA.
    def chol_solve(ops):
        a_, rhs_ = ops
        c = jnp.linalg.cholesky(a_)
        z = lax.linalg.triangular_solve(c, rhs_, left_side=True, lower=True,
                                        transpose_a=False)
        return lax.linalg.triangular_solve(c, z, left_side=True, lower=True,
                                           transpose_a=True)

    def general_solve(ops):
        a_, rhs_ = ops
        return jnp.linalg.solve(a_, rhs_)

    return lax.cond(reg > 1e-6, chol_solve, general_solve, (a, rhs))


@jax.jit
def ridge_regressor_forward(reprs, y, lam, reg_coeff=None):
    """Pallas-backed equivalent of RidgeRegressor.forward(reprs, x)."""
    reprs = reprs.astype(jnp.float32)
    y = y.astype(jnp.float32)
    if reg_coeff is None:
        reg_coeff = jax.nn.softplus(lam.astype(jnp.float32))
    reg = jnp.asarray(reg_coeff, jnp.float32).reshape(())
    reg_pref = reg.reshape(1)                      # (1,) scalar-prefetch operand

    batch, n_samples, n_dim = reprs.shape
    bb = _pick_block_batch(batch)

    # Lane-dense layout: long S axis on the 128-lane dim (layout plumbing only).
    rt = jnp.swapaxes(reprs, 1, 2)                 # (B, D, S)
    yt = jnp.swapaxes(y, 1, 2)                     # (B, O, S)

    if n_samples >= n_dim:
        d1 = n_dim + 1
        slab = _normal_equations(rt, yt, reg_pref, bb)     # Pallas: [A | B]
        a = slab[:, :, :d1]
        bm = slab[:, :, d1:]
        weights = _solve(a, bm, reg)                       # XLA solve
    else:
        g = _sample_gram(rt, reg_pref, bb)                 # Pallas
        z = _solve(g, y, reg)                              # XLA solve, (B, S, O)
        zt = jnp.swapaxes(z, 1, 2)                         # (B, O, S)
        weights = _xt_matmul(rt, zt, bb)                   # Pallas

    return weights[:, :-1], weights[:, -1:]


# ----------------------------------------------------------------------------
# Pure-JAX reference (mirrors the PyTorch code) for a silent correctness check
# ----------------------------------------------------------------------------
def _ridge_ref(reprs, y, lam, reg_coeff=None):
    reprs = reprs.astype(jnp.float32)
    y = y.astype(jnp.float32)
    if reg_coeff is None:
        reg_coeff = jax.nn.softplus(lam.astype(jnp.float32))
    b, s, d = reprs.shape
    x = jnp.concatenate([reprs, jnp.ones((b, s, 1), jnp.float32)], axis=-1)
    if s >= d:
        a = jnp.einsum("bsi,bsj->bij", x, x) + reg_coeff * jnp.eye(d + 1)
        bm = jnp.einsum("bsi,bso->bio", x, y)
        w = jnp.linalg.solve(a, bm)
    else:
        g = jnp.einsum("bsd,btd->bst", x, x) + reg_coeff * jnp.eye(s)
        w = jnp.einsum("bsd,bso->bdo", x, jnp.linalg.solve(g, y))
    return w[:, :-1], w[:, -1:]


if __name__ == "__main__":
    key = jax.random.PRNGKey(0)
    k1, k2, k3, k4, k5 = jax.random.split(key, 5)

    # Deterministic parameter init: lambda_init = 0.0 (as in the module ctor).
    lam = jnp.asarray(0.0, jnp.float32)

    def check(reprs, targets):
        w, b = ridge_regressor_forward(reprs, targets, lam)
        w, b = jax.block_until_ready(w), jax.block_until_ready(b)
        w_ref, b_ref = _ridge_ref(reprs, targets, lam)
        B, _, D = reprs.shape
        O = targets.shape[-1]
        assert w.shape == (B, D, O) and b.shape == (B, 1, O)
        assert jnp.allclose(w, w_ref, rtol=1e-3, atol=1e-3), \
            float(jnp.max(jnp.abs(w - w_ref)))
        assert jnp.allclose(b, b_ref, rtol=1e-3, atol=1e-3), \
            float(jnp.max(jnp.abs(b - b_ref)))

    # Branch 1: n_samples >= n_dim, small batch.
    check(jax.random.normal(k1, (2, 16, 8), jnp.float32),
          jax.random.normal(k2, (2, 16, 4), jnp.float32))

    # Branch 2: n_samples < n_dim (kernel-trick path), small batch.
    check(jax.random.normal(k3, (2, 4, 8), jnp.float32),
          jax.random.normal(k4, (2, 4, 4), jnp.float32))

    # Larger batches: exercise block-batching (bb=4 -> 4 grid steps).
    check(jax.random.normal(k5, (16, 32, 8), jnp.float32),
          jax.random.normal(k1, (16, 32, 4), jnp.float32))
    check(jax.random.normal(k2, (16, 4, 16), jnp.float32),
          jax.random.normal(k3, (16, 4, 4), jnp.float32))

    print("KERNEL_OK")
</pallas_src>

<mosaic_0001>
module attributes {stable_mosaic.version = 11 : i64} {
  func.func @_normal_eq_kernel(%arg0: i32, %arg1: i32, %arg2: memref<1xf32, #tpu.memory_space<smem>>, %arg3: memref<1x8x16xf32, #tpu.memory_space<vmem>>, %arg4: memref<1x4x16xf32, #tpu.memory_space<vmem>>, %arg5: memref<1x9x13xf32, #tpu.memory_space<vmem>>) attributes {dimension_semantics = [#tpu.dimension_semantics<parallel>, #tpu.dimension_semantics<arbitrary>], iteration_bounds = array<i64: 2, 1>, scalar_prefetch = 1 : i64, scratch_operands = 0 : i64, tpu.core_type = #tpu.core_type<tc>, window_params = [{transform_indices = @transform_0, window_bounds = array<i64: 1, 8, 16>}, {transform_indices = @transform_1, window_bounds = array<i64: 1, 4, 16>}, {transform_indices = @transform_2, window_bounds = array<i64: 1, 9, 13>}]} {
    %c0 = arith.constant 0 : index
    %c0_0 = arith.constant 0 : index
    %c0_1 = arith.constant 0 : index
    %0 = vector.load %arg3[%c0, %c0_0, %c0_1] : memref<1x8x16xf32, #tpu.memory_space<vmem>>, vector<1x8x16xf32>
    %c0_2 = arith.constant 0 : index
    %c0_3 = arith.constant 0 : index
    %c0_4 = arith.constant 0 : index
    %1 = vector.load %arg4[%c0_2, %c0_3, %c0_4] : memref<1x4x16xf32, #tpu.memory_space<vmem>>, vector<1x4x16xf32>
    %cst = arith.constant 1.000000e+00 : f32
    %2 = vector.broadcast %cst : f32 to vector<1x1x16xf32>
    %3 = tpu.concatenate %0, %2 in 1 : vector<1x8x16xf32>, vector<1x1x16xf32> -> vector<1x9x16xf32>
    %4 = tpu.concatenate %3, %1 in 1 : vector<1x9x16xf32>, vector<1x4x16xf32> -> vector<1x13x16xf32>
    "tpu.trace_start"() <{level = 10 : i32, message = "bis,bjs->bij"}> : () -> ()
    %cst_5 = arith.constant dense<0.000000e+00> : vector<1x9x13xf32>
    %5 = tpu.matmul %3, %4, %cst_5 {dimension_numbers = #tpu.dot_dimension_numbers<[2], [2], [1], [1], [0, 0, 0, 1, 1, 1], [0], [0]>} : vector<1x9x16xf32>, vector<1x13x16xf32>, vector<1x9x13xf32> -> vector<1x9x13xf32>
    %c0_i32 = arith.constant 0 : i32
    "tpu.trace_stop"() : () -> ()
    %6 = arith.cmpi eq, %arg1, %c0_i32 : i32
    %7 = arith.extui %6 : i1 to i32
    %c0_i32_6 = arith.constant 0 : i32
    %8 = arith.cmpi ne, %7, %c0_i32_6 : i32
    scf.if %8 {
      %c0_13 = arith.constant 0 : index
      %12 = memref.load %arg2[%c0_13] : memref<1xf32, #tpu.memory_space<smem>>
      %13 = tpu.iota {dimensions = array<i32: 0>} : vector<9x13xi32>
      %14 = tpu.iota {dimensions = array<i32: 1>} : vector<9x13xi32>
      %15 = arith.cmpi eq, %13, %14 : vector<9x13xi32>
      %16 = arith.extui %15 : vector<9x13xi1> to vector<9x13xi32>
      %17 = arith.sitofp %16 : vector<9x13xi32> to vector<9x13xf32>
      %18 = vector.broadcast %12 : f32 to vector<9x13xf32>
      %19 = arith.mulf %17, %18 : vector<9x13xf32>
      %20 = vector.shape_cast %19 : vector<9x13xf32> to vector<1x9x13xf32>
      %c0_14 = arith.constant 0 : index
      %c0_15 = arith.constant 0 : index
      %c0_16 = arith.constant 0 : index
      %21 = vector.load %arg5[%c0_14, %c0_15, %c0_16] : memref<1x9x13xf32, #tpu.memory_space<vmem>>, vector<1x9x13xf32>
      tpu.vector_store %arg5[%c0_14, %c0_15, %c0_16], %20 {strides = array<i32>} : memref<1x9x13xf32, #tpu.memory_space<vmem>>, vector<1x9x13xf32>,
    } else {
    }
    %c0_7 = arith.constant 0 : index
    %c0_8 = arith.constant 0 : index
    %c0_9 = arith.constant 0 : index
    %9 = vector.load %arg5[%c0_7, %c0_8, %c0_9] : memref<1x9x13xf32, #tpu.memory_space<vmem>>, vector<1x9x13xf32>
    %10 = arith.addf %9, %5 : vector<1x9x13xf32>
    %c0_10 = arith.constant 0 : index
    %c0_11 = arith.constant 0 : index
    %c0_12 = arith.constant 0 : index
    %11 = vector.load %arg5[%c0_10, %c0_11, %c0_12] : memref<1x9x13xf32, #tpu.memory_space<vmem>>, vector<1x9x13xf32>
    tpu.vector_store %arg5[%c0_10, %c0_11, %c0_12], %10 {strides = array<i32>} : memref<1x9x13xf32, #tpu.memory_space<vmem>>, vector<1x9x13xf32>,
    return
  }
  func.func @transform_0(%arg0: i32, %arg1: i32, %arg2: memref<1xf32, #tpu.memory_space<smem>>) -> (i32, i32, i32) {
    %c0_i32 = arith.constant 0 : i32
    %c0_i32_0 = arith.constant 0 : i32
    return %arg0, %c0_i32, %arg1 : i32, i32, i32
  }
  func.func @transform_1(%arg0: i32, %arg1: i32, %arg2: memref<1xf32, #tpu.memory_space<smem>>) -> (i32, i32, i32) {
    %c0_i32 = arith.constant 0 : i32
    %c0_i32_0 = arith.constant 0 : i32
    return %arg0, %c0_i32, %arg1 : i32, i32, i32
  }
  func.func @transform_2(%arg0: i32, %arg1: i32, %arg2: memref<1xf32, #tpu.memory_space<smem>>) -> (i32, i32, i32) {
    %c0_i32 = arith.constant 0 : i32
    %c0_i32_0 = arith.constant 0 : i32
    %c0_i32_1 = arith.constant 0 : i32
    return %arg0, %c0_i32, %c0_i32_0 : i32, i32, i32
  }
}

</mosaic_0001>

<llo_original>
// kernel: custom-call.11
$region0: #{custom-call.11}
  %s0 = inlined_call_operand.vmem [shape: f32[2,9,9], index: 0, kind: input, shape index: {}]
  %s1 = inlined_call_operand.vmem [shape: f32[2,9,9], index: 1, kind: output, shape index: {0}]
  %s2 = inlined_call_operand.hbm [shape: s32[2,9], index: 2, kind: output, shape index: {1}]
  %s3 = inlined_call_operand.vmem [shape: s32[2,9], index: 3, kind: output, shape index: {2}]
  %4 = xla_tuple %s1, %s2, %s3
  $region1: #{custom-call.11} parent=0
    #allocation0 [shape = 'u8[16384]{0}', space=vmem, size = 0x4000, scoped, tag = 'operand span for operand 0']
    #allocation1 [shape = 'u8[16384]{0}', space=vmem, size = 0x4000, scoped, tag = 'operand span for operand 1']
    #allocation2 [shape = 'u8[4096]{0}', space=vmem, size = 0x1000, scoped, tag = 'operand span for operand 2']
    #allocation3 [shape = 'u8[2048]{0}', space=vmem, size = 0x800, scoped, tag = 'packed  for operand 2']
    #allocation4 [shape = 's32[2]{0}', space=sflag, size = 0x8, scoped, tag = 'scoped memory for custom-call.11']
    #allocation5 [shape = 'u8[4096]{0}', space=vmem, size = 0x1000, scoped, tag = 'operand span for operand 3']
    #allocation6 [shape = 'u8[2048]{0}', space=vmem, size = 0x800, scoped, tag = 'packed  for operand 3']
    %5 = vsyncpa [#allocation4], 0
    %s6 = scalar_lea.sflag [#allocation4], 1
    %7 = vsyncpa %s6, 0
    loop: start=0, step=1, limit=4
    $region2: #{custom-call.11} parent=1 // loop_pre_header
      _
    $region3: #{custom-call.11} parent=1 // loop_header
      %s9 = sphi 0, %s13
      %p10 = scmp.ge.s32.totalorder %s9, 4
      %s21 = sphi 0, %s23
      %s24 = sphi 0, %s21
      %s25 = sphi 0, %s24
      %s41 = sphi 0, %s25
      %s49 = sphi 0, %s51
      %s52 = sphi 0, %s49
      %s53 = sphi 0, %s52
      %s69 = sphi 0, %s53
    $region4: #{custom-call.11} parent=1 // loop_header_branch
      %12 = sbr.rel (%p10) target = $region8
    $region5: #{custom-call.11} parent=1 // loop_body
      %s14 = ssub.s32 %s9, 1
      %s15 = ssub.s32 %s9, 2
      %s16 = sadd.s32 %s9, 1
      %s17 = sshrl.u32 %s9, 3
      %s18 = sshrl.u32 %s16, 3
      %s19 = ssub.s32 %s17, %s18
      %p20 = scmp.eq.s32.totalorder %s19, 0
      %s22 = sadd.s32 %s21, 1
      %s23 = scalar_select %p20, %s21, %s22
      %p26 = pneg %p20
      %p27 = scmp.eq.s32.totalorder %s9, 1
      %p28 = por %p26, %p27
      %p29 = scmp.ne.s32.totalorder %s21, %s24
      %p30 = scmp.eq.s32.totalorder %s9, 0
      %p31 = por %p29, %p30
      %p32 = scmp.ne.s32.totalorder %s21, %s24
      %p33 = scmp.eq.s32.totalorder %s14, 1
      %p34 = por %p32, %p33
      %p35 = scmp.ne.s32.totalorder %s24, %s25
      %p36 = scmp.eq.s32.totalorder %s14, 0
      %p37 = por %p35, %p36
      %p38 = scmp.ne.s32.totalorder %s24, %s25
      %p39 = scmp.eq.s32.totalorder %s15, 1
      %p40 = por %p38, %p39
      %p42 = scmp.ne.s32.totalorder %s25, %s41
      %p43 = scmp.eq.s32.totalorder %s15, 0
      %p44 = por %p42, %p43
      %s45 = sshrl.u32 %s9, 3
      %s46 = sshrl.u32 %s16, 3
      %s47 = ssub.s32 %s45, %s46
      %p48 = scmp.eq.s32.totalorder %s47, 0
      %s50 = sadd.s32 %s49, 1
      %s51 = scalar_select %p48, %s49, %s50
      %p54 = pneg %p48
      %p55 = scmp.eq.s32.totalorder %s9, 1
      %p56 = por %p54, %p55
      %p57 = scmp.ne.s32.totalorder %s49, %s52
      %p58 = scmp.eq.s32.totalorder %s9, 0
      %p59 = por %p57, %p58
      %p60 = scmp.ne.s32.totalorder %s49, %s52
      %p61 = scmp.eq.s32.totalorder %s14, 1
      %p62 = por %p60, %p61
      %p63 = scmp.ne.s32.totalorder %s52, %s53
      %p64 = scmp.eq.s32.totalorder %s14, 0
      %p65 = por %p63, %p64
      %p66 = scmp.ne.s32.totalorder %s52, %s53
      %p67 = scmp.eq.s32.totalorder %s15, 1
      %p68 = por %p66, %p67
      %p70 = scmp.ne.s32.totalorder %s53, %s69
      %p71 = scmp.eq.s32.totalorder %s15, 0
      %p72 = por %p70, %p71
      %p73 = scmp.le.s32.totalorder 1, %s9
      %p74 = scmp.lt.s32.totalorder %s9, 3
      %p75 = pnand %p73, %p74
      %p76 = pneg %p75
      // Predicated region
      $region9: #{custom-call.11} parent=5 // pred_check
        _
      $region10: #{custom-call.11} parent=5 // pred_check_branch
        %78 = sbr.rel (%p75) target = $region12
      $region11: #{custom-call.11} parent=5 // pred_region
        %s79 = ssub.s32 %s9, 1
      $region12: #{custom-call.11} parent=5 // pred_fallthru
        _
      %p80 = scmp.lt.s32.totalorder %s9, 2
      // Predicated region
      $region13: #{custom-call.11} parent=5 // pred_check
        %p81 = pneg %p80
      $region14: #{custom-call.11} parent=5 // pred_check_branch
        %83 = sbr.rel (%p81) target = $region16
      $region15: #{custom-call.11} parent=5 // pred_region
        %s84 = sand.u32 %s9, 1
        %s85 = sand.u32 %s9, 1
        %s86 = smul.addr %s85, 16
        %s87 = scalar_lea.vmem [#allocation0], %s86
        %s88 = smul.addr %s9, 16
        %s89 = scalar_lea.vmem %s0, %s88
        // Predicated region
        $region17: #{custom-call.11} parent=15 // pred_check
          _
        $region18: #{custom-call.11} parent=15 // pred_check_branch
          %91 = sbr.rel (0) target = $region20
        $region19: #{custom-call.11} parent=15 // pred_region
          // Predicated region
          $region21: #{custom-call.11} parent=19 // pred_check
            _
          $region22: #{custom-call.11} parent=19 // pred_check_branch
            %93 = sbr.rel (0) target = $region24
          $region23: #{custom-call.11} parent=19 // pred_region
            loop: start=0, step=1, limit=1
            $region25: #{custom-call.11} parent=23 // loop_pre_header
              _
            $region26: #{custom-call.11} parent=23 // loop_header
              %s95 = sphi 0, %s99
              %p96 = scmp.ge.s32.totalorder %s95, 1
              %s100 = sphi %s89, %s89
              %s101 = sphi %s87, %s87
            $region27: #{custom-call.11} parent=23 // loop_header_branch
              %98 = sbr.rel (%p96) target = $region31
            $region28: #{custom-call.11} parent=23 // loop_body
              %v102 = vld [vmem:[%s100] sm:$0xff]
              %103 = vst [vmem:[%s101] sm:$0xff] %v102
              %v104 = vld [vmem:[%s100 + $0x8] sm:$0xff]
              %105 = vst [vmem:[%s101 + $0x8] sm:$0xff] %v104
            $region29: #{custom-call.11} parent=23 // loop_footer
              %s99 = sadd.s32 1, %s95
            $region30: #{custom-call.11} parent=23 // loop_footer_branch
              %94 = sbr.rel target = $region26
            $region31: #{custom-call.11} parent=23 // loop_exit
              _
          $region24: #{custom-call.11} parent=19 // pred_fallthru
            _
          // Predicated region
          $region32: #{custom-call.11} parent=19 // pred_check
            _
          $region33: #{custom-call.11} parent=19 // pred_check_branch
            %107 = sbr.rel target = $region35
          $region34: #{custom-call.11} parent=19 // pred_region
            _
          $region35: #{custom-call.11} parent=19 // pred_fallthru
            _
        $region20: #{custom-call.11} parent=15 // pred_fallthru
          _
        %108 = vnop
      $region16: #{custom-call.11} parent=5 // pred_fallthru
        _
      %p109 = scmp.le.s32.totalorder 1, %s9
      %p110 = scmp.lt.s32.totalorder %s9, 3
      %p111 = pnand %p109, %p110
      %p112 = pneg %p111
      // Predicated region
      $region36: #{custom-call.11} parent=5 // pred_check
        _
      $region37: #{custom-call.11} parent=5 // pred_check_branch
        %114 = sbr.rel (%p111) target = $region39
      $region38: #{custom-call.11} parent=5 // pred_region
        #allocation7 [shape = 's32[9,128]{1,0}', space=vmem, size = 0x2000, scoped, tag = 'scratch for permutations']
        %s115 = ssub.s32 %s9, 1
        %s116 = sand.u32 %s14, 1
        %s117 = sand.u32 %s14, 1
        %s118 = smul.addr %s117, 16
        %s119 = scalar_lea.vmem [#allocation0], %s118
        %s120 = sand.u32 %s14, 1
        %s121 = sand.u32 %s14, 1
        %s122 = smul.addr %s121, 16
        %s123 = scalar_lea.vmem [#allocation0], %s122
        %s124 = sand.u32 %s14, 1
        %s125 = sand.u32 %s14, 1
        %s126 = smul.addr %s125, 16
        %s127 = scalar_lea.vmem [#allocation1], %s126
        %p128 = pneg %p37
        %p129 = pneg %p34
        %s130 = sand.u32 %s24, 1
        %s131 = scalar_lea.sflag [#allocation4], %s130
        %s132 = sand.u32 %s24, 1
        %s133 = smul.addr %s132, 2
        %s134 = scalar_lea.vmem [#allocation3], %s133
        %p135 = pneg %p65
        %p136 = pneg %p62
        %s137 = sand.u32 %s52, 1
        %s138 = sand.u32 %s52, 1
        %s139 = smul.addr %s138, 2
        %s140 = scalar_lea.vmem [#allocation6], %s139
        %s141 = sshrl.u32 %s14, 3
        %s142 = sshrl.u32 %s14, 3
        %v143 = vld [vmem:[%s119] sm:$0xff]
        %144 = vst [vmem:[%s127] sm:$0xff] %v143
        %s145 = scalar_lea.vmem %s127, 8 [#allocation1]
        %s146 = scalar_lea.vmem %s119, 8 [#allocation0]
        %v147 = vld [vmem:[%s146] sm:$0xff]
        %148 = vst [vmem:[%s145] sm:$0xff] %v147
        %s149 = sand.u32 %s14, 7
        %s150 = scalar_lea.vmem [#allocation2], %s149
        %s151 = sand.u32 %s14, 7
        %s152 = scalar_lea.vmem [#allocation5], %s151
        %153 = vst [vmem:[%s150] sm:$0x1] 0
        %v154 = vlaneseq
        %v155 = vshrl.u32 %v154, 7
        %v156 = vmov %v155
        loop: start=0, step=1, limit=2
        $region40: #{custom-call.11} parent=38 // loop_pre_header
          _
        $region41: #{custom-call.11} parent=38 // loop_header
          %s158 = sphi 0, %s162
          %p159 = scmp.ge.s32.totalorder %s158, 2
        $region42: #{custom-call.11} parent=38 // loop_header_branch
          %161 = sbr.rel (%p159) target = $region46
        $region43: #{custom-call.11} parent=38 // loop_body
          %s163 = smul.addr %s158, 8
          %s164 = scalar_lea.vmem [#allocation7], %s163
          %s165 = smul.u32 %s158, 8
          %v166 = vstv %s165
          %v167 = vadd.s32 %v156, %v166
          %168 = vst [vmem:[%s164] sm:$0xff] %v167
        $region44: #{custom-call.11} parent=38 // loop_footer
          %s162 = sadd.s32 1, %s158
        $region45: #{custom-call.11} parent=38 // loop_footer_branch
          %157 = sbr.rel target = $region41
        $region46: #{custom-call.11} parent=38 // loop_exit
          _
        loop: start=0, step=1, limit=9
        $region47: #{custom-call.11} parent=38 // loop_pre_header
          _
        $region48: #{custom-call.11} parent=38 // loop_header
          %s170 = sphi 0, %s174
          %p171 = scmp.ge.s32.totalorder %s170, 9
        $region49: #{custom-call.11} parent=38 // loop_header_branch
          %173 = sbr.rel (%p171) target = $region53
        $region50: #{custom-call.11} parent=38 // loop_body
          %v175 = vstv %s170
          %v176 = vlaneseq
          %v177 = vshrl.u32 %v176, 7
          %v178 = vmov %v177
          %v179 = vld [vmem:[%s127] sm:$0xff]
          %v180 = vand.u32 2147483647, %v179
          %v182 = vstv %s170
          %vm183 = vcmp.ge.s32.totalorder %v178, %v182
          %vm184 = vcmp.lt.s32.totalorder %v178, 9
          %vm185 = vmand %vm183, %vm184
          %vm186 = vcmp.lt.f32.partialorder -inf, %v180
          %vm187 = vmand %vm185, %vm186
          %v188 = vsel %vm187, %v178, %v175
          %v189 = vsel %vm187, %v180, -inf
          %s190 = scalar_lea.vmem %s127, 8 [#allocation1]
          %v191 = vld [vmem:[%s190] sm:$0xff]
          %v192 = vand.u32 2147483647, %v191
          %v193 = vadd.s32 %v178, 8
          %v194 = vstv %s170
          %vm195 = vcmp.ge.s32.totalorder %v193, %v194
          %vm196 = vcmp.lt.s32.totalorder %v193, 9
          %vm197 = vmand %vm195, %vm196
          %vm198 = vcmp.lt.f32.partialorder %v189, %v192
          %vm199 = vmand %vm197, %vm198
          %v200 = vsel %vm199, %v193, %v188
          %v201 = vsel %vm199, %v192, %v189
          %v202 = vrot.slane %v201, 1
          %v203 = vrot.slane %v200, 1
          %vm204 = vcmp.ge.f32.partialorder %v202, %v201
          %v205 = vsel %vm204, %v202, %v201
          %v206 = vsel %vm204, %v203, %v200
          %v207 = vrot.slane %v202, 1
          %v208 = vrot.slane %v203, 1
          %vm209 = vcmp.ge.f32.partialorder %v207, %v205
          %v210 = vsel %vm209, %v207, %v205
          %v211 = vsel %vm209, %v208, %v206
          %v212 = vrot.slane %v207, 1
          %v213 = vrot.slane %v208, 1
          %vm214 = vcmp.ge.f32.partialorder %v212, %v210
          %v215 = vsel %vm214, %v212, %v210
          %v216 = vsel %vm214, %v213, %v211
          %v217 = vrot.slane %v212, 1
          %v218 = vrot.slane %v213, 1
          %vm219 = vcmp.ge.f32.partialorder %v217, %v215
          %v220 = vsel %vm219, %v217, %v215
          %v221 = vsel %vm219, %v218, %v216
          %v222 = vrot.slane %v217, 1
          %v223 = vrot.slane %v218, 1
          %vm224 = vcmp.ge.f32.partialorder %v222, %v220
          %v225 = vsel %vm224, %v222, %v220
          %v226 = vsel %vm224, %v223, %v221
          %v227 = vrot.slane %v222, 1
          %v228 = vrot.slane %v223, 1
          %vm229 = vcmp.ge.f32.partialorder %v227, %v225
          %v230 = vsel %vm229, %v227, %v225
          %v231 = vsel %vm229, %v228, %v226
          %v232 = vrot.slane %v227, 1
          %v233 = vrot.slane %v228, 1
          %vm234 = vcmp.ge.f32.partialorder %v232, %v230
          %v235 = vsel %vm234, %v232, %v230
          %v236 = vsel %vm234, %v233, %v231
          %s237 = ssub.s32 128, %s170
          %238 = vrot.lane.b32.xlu0 %v236, %s237
          %v239 = vpop.permute.xlu0 %238
          %s240 = vtos %v239
          %v241 = vstv %s170
          %v242 = vlaneseq
          %v243 = vand.u32 %v242, 127
          %vm244 = vcmp.eq.s32.totalorder %v243, %v241
          %v245 = vstv %s240
          %v246 = vld [vmem:[%s150] ss:$0 sm:$0xff]
          %v247 = vsel %vm244, %v245, %v246
          %248 = vst [vmem:[%s150] sm:$0x1] %v247
          %s249 = scalar_lea.vmem %s127, %s170 [#allocation1]
          %s250 = scalar_lea.vmem %s127, %s240 [#allocation1]
          %v251 = vld [vmem:[%s249] ss:$0 sm:$0xff]
          %v252 = vld [vmem:[%s250] ss:$0 sm:$0xff]
          %253 = vst [vmem:[%s250] sm:$0x1] %v251
          %254 = vst [vmem:[%s249] sm:$0x1] %v252
          %s255 = scalar_lea.vmem [#allocation7], %s170
          %s256 = scalar_lea.vmem [#allocation7], %s240
          %v257 = vld [vmem:[%s255] ss:$0 sm:$0xff]
          %v258 = vld [vmem:[%s256] ss:$0 sm:$0xff]
          %259 = vst [vmem:[%s256] sm:$0x1] %v257
          %260 = vst [vmem:[%s255] sm:$0x1] %v258
          %vm261 = vcmp.ne.f32.partialorder %v252, 0.0
          %vm262 = vmand %vm244, %vm261
          %v263 = vsel %vm262, %v252, 1.0
          %v264 = vlaneseq
          %v265 = vand.u32 %v264, 127
          %v266 = vstv %s170
          %vm267 = vcmp.gt.s32.totalorder %v265, %v266
          %v268 = vsel %vm267, %v252, 0.0
          %v269 = vlaneseq
          %v270 = vshrl.u32 %v269, 7
          %v271 = vmov %v270
          %v272 = vld [vmem:[%s127] sm:$0xff]
          %v274 = vstv %s170
          %vm275 = vcmp.gt.s32.totalorder %v271, %v274
          %v276 = vsel %vm275, %v263, 1.0
          %v277 = vrcp.pop %v276
          %v278 = vmul.f32 %v272, %v277
          %vm279 = vmand %vm275, %vm244
          %v280 = vsel %vm279, %v278, 0.0
          %281 = vadd.xlane.f32.xlu0 %v280
          %v282 = vpop.xlane.xlu0 %281
          %v283 = vmul.f32 %v282, %v268
          %v284 = vsub.f32 %v278, %v283
          %285 = vst [vmem:[%s127] sm:$0xff] %v284
          %s286 = scalar_lea.vmem %s127, 8 [#allocation1]
          %v287 = vld [vmem:[%s286] sm:$0xff]
          %v288 = vadd.s32 %v271, 8
          %v289 = vstv %s170
          %vm290 = vcmp.gt.s32.totalorder %v288, %v289
          %v291 = vsel %vm290, %v263, 1.0
          %v292 = vrcp.pop %v291
          %v293 = vmul.f32 %v287, %v292
          %vm294 = vmand %vm290, %vm244
          %v295 = vsel %vm294, %v293, 0.0
          %296 = vadd.xlane.f32.xlu0 %v295
          %v297 = vpop.xlane.xlu0 %296
          %v298 = vmul.f32 %v297, %v268
          %v299 = vsub.f32 %v293, %v298
          %300 = vst [vmem:[%s286] sm:$0xff] %v299
        $region51: #{custom-call.11} parent=38 // loop_footer
          %s174 = sadd.s32 1, %s170
        $region52: #{custom-call.11} parent=38 // loop_footer_branch
          %169 = sbr.rel target = $region48
        $region53: #{custom-call.11} parent=38 // loop_exit
          _
        %v301 = vld [vmem:[#allocation7] sm:$0xff]
        %s302 = scalar_lea.vmem [#allocation7], 8
        %v303 = vld [vmem:[%s302] sm:$0xff]
        %s304 = scalar_lea.vmem [#allocation7], 16
        %s305 = scalar_lea.vmem [#allocation7], 24
        %s306 = scalar_lea.vmem [#allocation7], 32
        %s307 = scalar_lea.vmem [#allocation7], 40
        %s308 = scalar_lea.vmem [#allocation7], 48
        %s309 = scalar_lea.vmem [#allocation7], 56
        %s310 = scalar_lea.vmem [#allocation7], 64
        %s311 = scalar_lea.vmem [#allocation7], 72
        %s312 = scalar_lea.vmem [#allocation7], 80
        %s313 = scalar_lea.vmem [#allocation7], 88
        %s314 = scalar_lea.vmem [#allocation7], 96
        %s315 = scalar_lea.vmem [#allocation7], 104
        %s316 = scalar_lea.vmem [#allocation7], 112
        %s317 = scalar_lea.vmem [#allocation7], 120
        %318 = vxpose.xlu0.b32.start [1/16] %v301, 128
        %319 = vxpose.xlu0.b32.cont [2/16] %v303, 128
        %320 = vxpose.xlu0.b32.cont [3/16] 0, 128
        %321 = vxpose.xlu0.b32.cont [4/16] 0, 128
        %322 = vxpose.xlu0.b32.cont [5/16] 0, 128
        %323 = vxpose.xlu0.b32.cont [6/16] 0, 128
        %324 = vxpose.xlu0.b32.cont [7/16] 0, 128
        %325 = vxpose.xlu0.b32.cont [8/16] 0, 128
        %326 = vxpose.xlu0.b32.cont [9/16] 0, 128
        %327 = vxpose.xlu0.b32.cont [10/16] 0, 128
        %328 = vxpose.xlu0.b32.cont [11/16] 0, 128
        %329 = vxpose.xlu0.b32.cont [12/16] 0, 128
        %330 = vxpose.xlu0.b32.cont [13/16] 0, 128
        %331 = vxpose.xlu0.b32.cont [14/16] 0, 128
        %332 = vxpose.xlu0.b32.cont [15/16] 0, 128
        %333 = vxpose.xlu0.b32.end [16/16] 0, 128
        %v334 = vpop.trf.xlu0
        %v335 = vpop.trf.xlu0
        %v336 = vpop.trf.xlu0
        %v337 = vpop.trf.xlu0
        %v338 = vpop.trf.xlu0
        %v339 = vpop.trf.xlu0
        %v340 = vpop.trf.xlu0
        %v341 = vpop.trf.xlu0
        %v342 = vpop.trf.xlu0
        %v343 = vpop.trf.xlu0
        %v344 = vpop.trf.xlu0
        %v345 = vpop.trf.xlu0
        %v346 = vpop.trf.xlu0
        %v347 = vpop.trf.xlu0
        %v348 = vpop.trf.xlu0
        %v349 = vpop.trf.xlu0
        %350 = vst [vmem:[%s152] sm:$0x1] %v334
        %s352 = sshllo.u32 0, 2
        %v354 = vld [vmem:[#allocation2] sm:%s352]
        %s355 = sshllo.u32 0, 2
        %356 = vst [vmem:[%s134] sm:%s355] %v354
        %s358 = sshllo.u32 0, 2
        %v360 = vld [vmem:[#allocation5] sm:%s358]
        %s361 = sshllo.u32 0, 2
        %362 = vst [vmem:[%s140] sm:%s361] %v360
        %s363 = sand.u32 %s14, 1
        %s364 = sand.u32 %s14, 1
        %s365 = smul.addr %s364, 16
        %s366 = scalar_lea.vmem [#allocation1], %s365
        %s367 = sand.u32 %s24, 1
        %s368 = scalar_lea.sflag [#allocation4], %s367
        %s369 = sand.u32 %s24, 1
        %s370 = smul.addr %s369, 2
        %s371 = scalar_lea.vmem [#allocation3], %s370
        %s372 = sand.u32 %s52, 1
        %s373 = sand.u32 %s52, 1
        %s374 = smul.addr %s373, 2
        %s375 = scalar_lea.vmem [#allocation6], %s374
        %s376 = smul.addr %s14, 16
        %s377 = scalar_lea.vmem %s1, %s376
        // Predicated region
        $region54: #{custom-call.11} parent=38 // pred_check
          _
        $region55: #{custom-call.11} parent=38 // pred_check_branch
          %379 = sbr.rel (0) target = $region57
        $region56: #{custom-call.11} parent=38 // pred_region
          // Predicated region
          $region58: #{custom-call.11} parent=56 // pred_check
            _
          $region59: #{custom-call.11} parent=56 // pred_check_branch
            %381 = sbr.rel (0) target = $region61
          $region60: #{custom-call.11} parent=56 // pred_region
            loop: start=0, step=1, limit=1
            $region62: #{custom-call.11} parent=60 // loop_pre_header
              _
            $region63: #{custom-call.11} parent=60 // loop_header
              %s383 = sphi 0, %s387
              %p384 = scmp.ge.s32.totalorder %s383, 1
              %s388 = sphi %s366, %s366
              %s389 = sphi %s377, %s377
            $region64: #{custom-call.11} parent=60 // loop_header_branch
              %386 = sbr.rel (%p384) target = $region68
            $region65: #{custom-call.11} parent=60 // loop_body
              %v390 = vld [vmem:[%s388] sm:$0xff]
              %391 = vst [vmem:[%s389] sm:$0xff] %v390
              %v392 = vld [vmem:[%s388 + $0x8] sm:$0xff]
              %393 = vst [vmem:[%s389 + $0x8] sm:$0xff] %v392
            $region66: #{custom-call.11} parent=60 // loop_footer
              %s387 = sadd.s32 1, %s383
            $region67: #{custom-call.11} parent=60 // loop_footer_branch
              %382 = sbr.rel target = $region63
            $region68: #{custom-call.11} parent=60 // loop_exit
              _
          $region61: #{custom-call.11} parent=56 // pred_fallthru
            _
          // Predicated region
          $region69: #{custom-call.11} parent=56 // pred_check
            _
          $region70: #{custom-call.11} parent=56 // pred_check_branch
            %395 = sbr.rel target = $region72
          $region71: #{custom-call.11} parent=56 // pred_region
            _
          $region72: #{custom-call.11} parent=56 // pred_fallthru
            _
        $region57: #{custom-call.11} parent=38 // pred_fallthru
          _
        %396 = vnop
        // Predicated region
        $region73: #{custom-call.11} parent=38 // pred_check
          %p397 = pneg %p34
        $region74: #{custom-call.11} parent=38 // pred_check_branch
          %399 = sbr.rel (%p397) target = $region76
        $region75: #{custom-call.11} parent=38 // pred_region
          %s400 = sshrl.u32 %s14, 3
          %s402 = ssub.s32 32, 32
          %403 = vsyncadd %s368, %s402
          %s404 = smul.addr %s400, 32
          %s405 = scalar_lea.hbm %s2, %s404
          %s407 = sshll.u32 %s371, 4
          %s408 = int_to_ptr.vmem [resolvable:$true] %s407
          %410 = dma.vmem_to_hbm [thread:$0]  %s408, 32, %s405, %s368
        $region76: #{custom-call.11} parent=38 // pred_fallthru
          _
        // Predicated region
        $region77: #{custom-call.11} parent=38 // pred_check
          %p411 = pneg %p62
        $region78: #{custom-call.11} parent=38 // pred_check_branch
          %413 = sbr.rel (%p411) target = $region80
        $region79: #{custom-call.11} parent=38 // pred_region
          %s414 = sshrl.u32 %s14, 3
          %s415 = smul.addr %s414, 2
          %s416 = scalar_lea.vmem %s3, %s415
          // Predicated region
          $region81: #{custom-call.11} parent=79 // pred_check
            _
          $region82: #{custom-call.11} parent=79 // pred_check_branch
            %418 = sbr.rel (0) target = $region84
          $region83: #{custom-call.11} parent=79 // pred_region
            // Predicated region
            $region85: #{custom-call.11} parent=83 // pred_check
              _
            $region86: #{custom-call.11} parent=83 // pred_check_branch
              %420 = sbr.rel target = $region88
            $region87: #{custom-call.11} parent=83 // pred_region
              // Predicated region
              $region100: #{custom-call.11} parent=87 // pred_check
                _
              $region101: #{custom-call.11} parent=87 // pred_check_branch
                %435 = sbr.rel (0) target = $region103
              $region102: #{custom-call.11} parent=87 // pred_region
                loop: start=0, step=1, limit=1
                $region104: #{custom-call.11} parent=102 // loop_pre_header
                  _
                $region105: #{custom-call.11} parent=102 // loop_header
                  %s438 = sphi 0, %s442
                  %p439 = scmp.ge.s32.totalorder %s438, 1
                  %s443 = sphi %s375, %s375
                  %s444 = sphi %s416, %s416
                $region106: #{custom-call.11} parent=102 // loop_header_branch
                  %441 = sbr.rel (%p439) target = $region110
                $region107: #{custom-call.11} parent=102 // loop_body
                  %v445 = vld [vmem:[%s443] sm:$0x3]
                  %446 = vst [vmem:[%s444] sm:$0x3] %v445
                $region108: #{custom-call.11} parent=102 // loop_footer
                  %s442 = sadd.s32 1, %s438
                $region109: #{custom-call.11} parent=102 // loop_footer_branch
                  %437 = sbr.rel target = $region105
                $region110: #{custom-call.11} parent=102 // loop_exit
                  _
              $region103: #{custom-call.11} parent=87 // pred_fallthru
                _
            $region88: #{custom-call.11} parent=83 // pred_fallthru
              _
            // Predicated region
            $region89: #{custom-call.11} parent=83 // pred_check
              _
            $region90: #{custom-call.11} parent=83 // pred_check_branch
              %422 = sbr.rel (0) target = $region92
            $region91: #{custom-call.11} parent=83 // pred_region
              loop: start=0, step=1, limit=1
              $region93: #{custom-call.11} parent=91 // loop_pre_header
                _
              $region94: #{custom-call.11} parent=91 // loop_header
                %s425 = sphi 0, %s429
                %p426 = scmp.ge.s32.totalorder %s425, 1
                %s430 = sphi %s375, %s375
                %s431 = sphi %s416, %s416
              $region95: #{custom-call.11} parent=91 // loop_header_branch
                %428 = sbr.rel (%p426) target = $region99
              $region96: #{custom-call.11} parent=91 // loop_body
                %v432 = vld [vmem:[%s430] sm:$0x3]
                %433 = vst [vmem:[%s431] sm:$0x3] %v432
              $region97: #{custom-call.11} parent=91 // loop_footer
                %s429 = sadd.s32 1, %s425
              $region98: #{custom-call.11} parent=91 // loop_footer_branch
                %424 = sbr.rel target = $region94
              $region99: #{custom-call.11} parent=91 // loop_exit
                _
            $region92: #{custom-call.11} parent=83 // pred_fallthru
              _
          $region84: #{custom-call.11} parent=79 // pred_fallthru
            _
          %447 = vnop
        $region80: #{custom-call.11} parent=38 // pred_fallthru
          _
      $region39: #{custom-call.11} parent=5 // pred_fallthru
        _
      %p448 = scmp.le.s32.totalorder 2, %s9
      // Predicated region
      $region111: #{custom-call.11} parent=5 // pred_check
        %p449 = pneg %p448
      $region112: #{custom-call.11} parent=5 // pred_check_branch
        %451 = sbr.rel (%p449) target = $region114
      $region113: #{custom-call.11} parent=5 // pred_region
        %s452 = ssub.s32 %s9, 2
        %s453 = sand.u32 %s15, 1
        %s454 = sand.u32 %s15, 1
        %s455 = smul.addr %s454, 16
        %s456 = scalar_lea.vmem [#allocation1], %s455
        // Predicated region
        $region115: #{custom-call.11} parent=113 // pred_check
          %p457 = pneg %p40
        $region116: #{custom-call.11} parent=113 // pred_check_branch
          %459 = sbr.rel (%p457) target = $region118
        $region117: #{custom-call.11} parent=113 // pred_region
          %s460 = sand.u32 %s25, 1
          %s461 = scalar_lea.sflag [#allocation4], %s460
          %s462 = sand.u32 %s25, 1
          %s463 = smul.addr %s462, 2
          %s464 = scalar_lea.vmem [#allocation3], %s463
          %465 = dma.done %s461, 32
        $region118: #{custom-call.11} parent=113 // pred_fallthru
          _
        // Predicated region
        $region119: #{custom-call.11} parent=113 // pred_check
          %p466 = pneg %p68
        $region120: #{custom-call.11} parent=113 // pred_check_branch
          %468 = sbr.rel (%p466) target = $region122
        $region121: #{custom-call.11} parent=113 // pred_region
          %s469 = sand.u32 %s53, 1
          %s470 = sand.u32 %s53, 1
          %s471 = smul.addr %s470, 2
          %s472 = scalar_lea.vmem [#allocation6], %s471
        $region122: #{custom-call.11} parent=113 // pred_fallthru
          _
      $region114: #{custom-call.11} parent=5 // pred_fallthru
        _
    $region6: #{custom-call.11} parent=1 // loop_footer
      %s13 = sadd.s32 1, %s9
    $region7: #{custom-call.11} parent=1 // loop_footer_branch
      %8 = sbr.rel target = $region3
    $region8: #{custom-call.11} parent=1 // loop_exit
      _
    %473 = vsyncpa [#allocation4], 1
    %s474 = scalar_lea.sflag [#allocation4], 1
    %475 = vsyncpa %s474, 1

// kernel: custom-call.13
$region0: #{custom-call.13}
  %s0 = inlined_call_operand.vmem [shape: f32[2,1,9,9], index: 0, kind: input, shape index: {}]
  %s1 = inlined_call_operand.vmem [shape: f32[2,1,9,9], index: 1, kind: output, shape index: {}]
  $region1: #{custom-call.13} parent=0
    #allocation0 [shape = 'u8[16384]{0}', space=vmem, size = 0x4000, scoped, tag = 'operand span for operand 0']
    #allocation1 [shape = 'u8[16384]{0}', space=vmem, size = 0x4000, scoped, tag = 'operand span for operand 1']
    loop: start=0, step=1, limit=4
    $region2: #{custom-call.13} parent=1 // loop_pre_header
      _
    $region3: #{custom-call.13} parent=1 // loop_header
      %s3 = sphi 0, %s7
      %p4 = scmp.ge.s32.totalorder %s3, 4
      %s10 = sphi 0, %s36
      %s11 = sphi 0, %s32
      %s12 = sphi 0, %s28
      %s13 = sphi 0, %s24
      %s14 = sphi 0, %s10
      %s15 = sphi 0, %s11
      %s16 = sphi 0, %s12
      %s17 = sphi 0, %s13
      %s18 = sphi 0, %s14
      %s19 = sphi 0, %s15
      %s20 = sphi 0, %s16
      %s21 = sphi 0, %s17
    $region4: #{custom-call.13} parent=1 // loop_header_branch
      %6 = sbr.rel (%p4) target = $region8
    $region5: #{custom-call.13} parent=1 // loop_body
      %s8 = ssub.s32 %s3, 1
      %s9 = ssub.s32 %s3, 2
      %s22 = sadd.s32 1, %s13
      %p23 = scmp.ge.s32.totalorder %s22, 1
      %s24 = scalar_select %p23, 0, %s22
      %s25 = sadd.s32 1, %s12
      %s26 = scalar_select %p23, %s25, %s12
      %p27 = scmp.ge.s32.totalorder %s26, 1
      %s28 = scalar_select %p27, 0, %s26
      %s29 = sadd.s32 1, %s11
      %s30 = scalar_select %p27, %s29, %s11
      %p31 = scmp.ge.s32.totalorder %s30, 1
      %s32 = scalar_select %p31, 0, %s30
      %s33 = sadd.s32 1, %s10
      %s34 = scalar_select %p31, %s33, %s10
      %p35 = scmp.ge.s32.totalorder %s34, 2
      %s36 = scalar_select %p35, 0, %s34
      %p37 = scmp.le.s32.totalorder 1, %s3
      %p38 = scmp.lt.s32.totalorder %s3, 3
      %p39 = pnand %p37, %p38
      %p40 = pneg %p39
      // Predicated region
      $region9: #{custom-call.13} parent=5 // pred_check
        _
      $region10: #{custom-call.13} parent=5 // pred_check_branch
        %42 = sbr.rel (%p39) target = $region12
      $region11: #{custom-call.13} parent=5 // pred_region
        %s43 = ssub.s32 %s3, 1
      $region12: #{custom-call.13} parent=5 // pred_fallthru
        _
      %p44 = scmp.lt.s32.totalorder %s3, 2
      // Predicated region
      $region13: #{custom-call.13} parent=5 // pred_check
        %p45 = pneg %p44
      $region14: #{custom-call.13} parent=5 // pred_check_branch
        %47 = sbr.rel (%p45) target = $region16
      $region15: #{custom-call.13} parent=5 // pred_region
        %s48 = sand.u32 %s3, 1
        %s49 = sand.u32 %s3, 1
        %s50 = smul.addr %s49, 16
        %s51 = scalar_lea.vmem [#allocation0], %s50
        %s52 = sadd.s32 %s13, %s12
        %s53 = smul.addr %s11, 2
        %s54 = sadd.s32 %s52, %s53
        %s55 = smul.addr %s10, 2
        %s56 = sadd.s32 %s54, %s55
        %s57 = smul.addr %s56, 8
        %s58 = scalar_lea.vmem %s0, %s57
        // Predicated region
        $region17: #{custom-call.13} parent=15 // pred_check
          _
        $region18: #{custom-call.13} parent=15 // pred_check_branch
          %60 = sbr.rel (0) target = $region20
        $region19: #{custom-call.13} parent=15 // pred_region
          // Predicated region
          $region21: #{custom-call.13} parent=19 // pred_check
            _
          $region22: #{custom-call.13} parent=19 // pred_check_branch
            %62 = sbr.rel (0) target = $region24
          $region23: #{custom-call.13} parent=19 // pred_region
            // Predicated region
            $region36: #{custom-call.13} parent=23 // pred_check
              _
            $region37: #{custom-call.13} parent=23 // pred_check_branch
              %79 = sbr.rel (0) target = $region39
            $region38: #{custom-call.13} parent=23 // pred_region
              loop: start=0, step=1, limit=1
              $region40: #{custom-call.13} parent=38 // loop_pre_header
                _
              $region41: #{custom-call.13} parent=38 // loop_header
                %s81 = sphi 0, %s85
                %p82 = scmp.ge.s32.totalorder %s81, 1
                %s86 = sphi %s58, %s58
                %s87 = sphi %s51, %s51
              $region42: #{custom-call.13} parent=38 // loop_header_branch
                %84 = sbr.rel (%p82) target = $region46
              $region43: #{custom-call.13} parent=38 // loop_body
                %v88 = vld [vmem:[%s86] sm:$0xff]
                %89 = vst [vmem:[%s87] sm:$0xff] %v88
                %v90 = vld [vmem:[%s86 + $0x8] sm:$0xff]
                %91 = vst [vmem:[%s87 + $0x8] sm:$0xff] %v90
              $region44: #{custom-call.13} parent=38 // loop_footer
                %s85 = sadd.s32 1, %s81
              $region45: #{custom-call.13} parent=38 // loop_footer_branch
                %80 = sbr.rel target = $region41
              $region46: #{custom-call.13} parent=38 // loop_exit
                _
            $region39: #{custom-call.13} parent=23 // pred_fallthru
              _
            // Predicated region
            $region47: #{custom-call.13} parent=23 // pred_check
              _
            $region48: #{custom-call.13} parent=23 // pred_check_branch
              %93 = sbr.rel target = $region50
            $region49: #{custom-call.13} parent=23 // pred_region
              _
            $region50: #{custom-call.13} parent=23 // pred_fallthru
              _
          $region24: #{custom-call.13} parent=19 // pred_fallthru
            _
          // Predicated region
          $region25: #{custom-call.13} parent=19 // pred_check
            _
          $region26: #{custom-call.13} parent=19 // pred_check_branch
            %64 = sbr.rel target = $region28
          $region27: #{custom-call.13} parent=19 // pred_region
            loop: start=0, step=1, limit=1
            $region29: #{custom-call.13} parent=27 // loop_pre_header
              _
            $region30: #{custom-call.13} parent=27 // loop_header
              %s67 = sphi 0, %s71
              %p68 = scmp.ge.s32.totalorder %s67, 1
              %s72 = sphi %s58, %s58
              %s73 = sphi %s51, %s51
            $region31: #{custom-call.13} parent=27 // loop_header_branch
              %70 = sbr.rel (%p68) target = $region35
            $region32: #{custom-call.13} parent=27 // loop_body
              %v74 = vld [vmem:[%s72] sm:$0xff]
              %75 = vst [vmem:[%s73] sm:$0xff] %v74
              %v76 = vld [vmem:[%s72 + $0x8] sm:$0xff]
              %77 = vst [vmem:[%s73 + $0x8] sm:$0xff] %v76
            $region33: #{custom-call.13} parent=27 // loop_footer
              %s71 = sadd.s32 1, %s67
            $region34: #{custom-call.13} parent=27 // loop_footer_branch
              %66 = sbr.rel target = $region30
            $region35: #{custom-call.13} parent=27 // loop_exit
              _
          $region28: #{custom-call.13} parent=19 // pred_fallthru
            _
        $region20: #{custom-call.13} parent=15 // pred_fallthru
          _
        %94 = vnop
      $region16: #{custom-call.13} parent=5 // pred_fallthru
        _
      %p95 = scmp.le.s32.totalorder 1, %s3
      %p96 = scmp.lt.s32.totalorder %s3, 3
      %p97 = pnand %p95, %p96
      %p98 = pneg %p97
      // Predicated region
      $region51: #{custom-call.13} parent=5 // pred_check
        _
      $region52: #{custom-call.13} parent=5 // pred_check_branch
        %100 = sbr.rel (%p97) target = $region54
      $region53: #{custom-call.13} parent=5 // pred_region
        #allocation2 [shape = 'f32[9,9]{1,0}', space=vmem, size = 0x2000, scoped, tag = 'rescaled input a']
        %s101 = ssub.s32 %s3, 1
        %s102 = sand.u32 %s8, 1
        %s103 = sand.u32 %s8, 1
        %s104 = smul.addr %s103, 16
        %s105 = scalar_lea.vmem [#allocation0], %s104
        %s106 = sand.u32 %s8, 1
        %s107 = sand.u32 %s8, 1
        %s108 = smul.addr %s107, 16
        %s109 = scalar_lea.vmem [#allocation0], %s108
        %s110 = sand.u32 %s8, 1
        %s111 = sand.u32 %s8, 1
        %s112 = smul.addr %s111, 16
        %s113 = scalar_lea.vmem [#allocation1], %s112
        %v114 = vlaneseq
        %v115 = vand.u32 %v114, 127
        %vm116 = vcmp.lt.s32.totalorder %v115, 9
        %v117 = vlaneseq
        %v118 = vshrl.u32 %v117, 7
        %vm120 = vcmp.eq.s32.totalorder %v118, %v115
        %v121 = vld [vmem:[%s105] sm:$0xff]
        %v122 = vsel %vm120, %v121, 0.0
        %123 = vadd.xlane.f32.xlu0 %v122
        %v124 = vpop.xlane.xlu0 %123
        %vm125 = vcmp.ge.s32.totalorder %v118, %v115
        %vm126 = vmand %vm125, %vm116
        %v127 = vsel %vm126, %v121, 0.0
        %v128 = vrcp.pop %v124
        %v129 = vmul.f32 %v127, %v128
        %130 = vst [vmem:[#allocation2] sm:$0xff] %v129
        %s131 = scalar_lea.vmem %s105, 8 [#allocation0]
        %s132 = scalar_lea.vmem [#allocation2], 8
        %v133 = vlaneseq
        %v134 = vshrl.u32 %v133, 7
        %v135 = vadd.s32 %v134, 8
        %vm136 = vcmp.eq.s32.totalorder %v135, %v115
        %v137 = vld [vmem:[%s131] sm:$0xff]
        %v138 = vsel %vm136, %v137, 0.0
        %139 = vadd.xlane.f32.xlu0 %v138
        %v140 = vpop.xlane.xlu0 %139
        %vm141 = vcmp.ge.s32.totalorder %v135, %v115
        %vm142 = vmand %vm141, %vm116
        %v143 = vsel %vm142, %v137, 0.0
        %v144 = vrcp.pop %v140
        %v145 = vmul.f32 %v143, %v144
        %146 = vst [vmem:[%s132] sm:$0xff] %v145
        %v147 = vlaneseq
        %v148 = vand.u32 %v147, 127
        %v149 = vlaneseq
        %v150 = vshrl.u32 %v149, 7
        %vm152 = vcmp.eq.s32.totalorder %v148, %v150
        %v153 = vlaneseq
        %v154 = vand.u32 %v153, 127
        %vm155 = vcmp.eq.s32.totalorder %v154, 0
        %v156 = vsel %vm155, 1.0, -1.0
        %v157 = vsel %vm152, %v156, 0.0
        %v158 = vlaneseq
        %v159 = vand.u32 %v158, 127
        %v160 = vlaneseq
        %v161 = vshrl.u32 %v160, 7
        %v162 = vadd.s32 %v161, 8
        %vm163 = vcmp.eq.s32.totalorder %v159, %v162
        %v164 = vsel %vm163, -1.0, 0.0
        %s165 = scalar_lea.vmem [#allocation2], 1
        %v166 = vld [vmem:[%s165] ss:$0 sm:$0xff]
        %v167 = vxor.u32 %v166, 2147483648
        %v168 = vlaneseq
        %v169 = vand.u32 %v168, 127
        %vm170 = vcmp.eq.s32.totalorder %v169, 1
        %v171 = vmul.f32 %v167, %v157
        %172 = vadd.xlane.f32.xlu0 %v171
        %v173 = vpop.xlane.xlu0 %172
        %v174 = vsel %vm170, %v173, %v157
        %s175 = scalar_lea.vmem [#allocation2], 2
        %v176 = vld [vmem:[%s175] ss:$0 sm:$0xff]
        %v177 = vxor.u32 %v176, 2147483648
        %v178 = vlaneseq
        %v179 = vand.u32 %v178, 127
        %vm180 = vcmp.eq.s32.totalorder %v179, 2
        %v181 = vmul.f32 %v177, %v174
        %182 = vadd.xlane.f32.xlu0 %v181
        %v183 = vpop.xlane.xlu0 %182
        %v184 = vsel %vm180, %v183, %v174
        %s185 = scalar_lea.vmem [#allocation2], 3
        %v186 = vld [vmem:[%s185] ss:$0 sm:$0xff]
        %v187 = vxor.u32 %v186, 2147483648
        %v188 = vlaneseq
        %v189 = vand.u32 %v188, 127
        %vm190 = vcmp.eq.s32.totalorder %v189, 3
        %v191 = vmul.f32 %v187, %v184
        %192 = vadd.xlane.f32.xlu0 %v191
        %v193 = vpop.xlane.xlu0 %192
        %v194 = vsel %vm190, %v193, %v184
        %s195 = scalar_lea.vmem [#allocation2], 4
        %v196 = vld [vmem:[%s195] ss:$0 sm:$0xff]
        %v197 = vxor.u32 %v196, 2147483648
        %v198 = vlaneseq
        %v199 = vand.u32 %v198, 127
        %vm200 = vcmp.eq.s32.totalorder %v199, 4
        %v201 = vmul.f32 %v197, %v194
        %202 = vadd.xlane.f32.xlu0 %v201
        %v203 = vpop.xlane.xlu0 %202
        %v204 = vsel %vm200, %v203, %v194
        %s205 = scalar_lea.vmem [#allocation2], 5
        %v206 = vld [vmem:[%s205] ss:$0 sm:$0xff]
        %v207 = vxor.u32 %v206, 2147483648
        %v208 = vlaneseq
        %v209 = vand.u32 %v208, 127
        %vm210 = vcmp.eq.s32.totalorder %v209, 5
        %v211 = vmul.f32 %v207, %v204
        %212 = vadd.xlane.f32.xlu0 %v211
        %v213 = vpop.xlane.xlu0 %212
        %v214 = vsel %vm210, %v213, %v204
        %s215 = scalar_lea.vmem [#allocation2], 6
        %v216 = vld [vmem:[%s215] ss:$0 sm:$0xff]
        %v217 = vxor.u32 %v216, 2147483648
        %v218 = vlaneseq
        %v219 = vand.u32 %v218, 127
        %vm220 = vcmp.eq.s32.totalorder %v219, 6
        %v221 = vmul.f32 %v217, %v214
        %222 = vadd.xlane.f32.xlu0 %v221
        %v223 = vpop.xlane.xlu0 %222
        %v224 = vsel %vm220, %v223, %v214
        %s225 = scalar_lea.vmem [#allocation2], 7
        %v226 = vld [vmem:[%s225] ss:$0 sm:$0xff]
        %v227 = vxor.u32 %v226, 2147483648
        %v228 = vlaneseq
        %v229 = vand.u32 %v228, 127
        %vm230 = vcmp.eq.s32.totalorder %v229, 7
        %v231 = vmul.f32 %v227, %v224
        %232 = vadd.xlane.f32.xlu0 %v231
        %v233 = vpop.xlane.xlu0 %232
        %v234 = vsel %vm230, %v233, %v224
        %s235 = scalar_lea.vmem [#allocation2], 8
        %v236 = vld [vmem:[%s235] ss:$0 sm:$0xff]
        %v237 = vxor.u32 %v236, 2147483648
        %v238 = vlaneseq
        %v239 = vand.u32 %v238, 127
        %vm240 = vcmp.eq.s32.totalorder %v239, 8
        %v241 = vmul.f32 %v237, %v234
        %242 = vadd.xlane.f32.xlu0 %v241
        %v243 = vpop.xlane.xlu0 %242
        %v244 = vsel %vm240, %v243, %v234
        %v245 = vmul.f32 %v237, %v164
        %246 = vadd.xlane.f32.xlu0 %v245
        %v247 = vpop.xlane.xlu0 %246
        %v248 = vsel %vm240, %v247, %v164
        %v249 = vrcp.pop %v124
        %v250 = vmul.f32 %v244, %v249
        %vm251 = vweird.f32 %v124
        %v252 = vsel %vm251, %v244, %v250
        %253 = vst [vmem:[%s113] sm:$0xff] %v252
        %v254 = vrcp.pop %v140
        %v255 = vmul.f32 %v248, %v254
        %vm256 = vweird.f32 %v140
        %v257 = vsel %vm256, %v248, %v255
        %s258 = scalar_lea.vmem %s113, 8 [#allocation1]
        %259 = vst [vmem:[%s258] sm:$0xff] %v257
        %s260 = sand.u32 %s8, 1
        %s261 = sand.u32 %s8, 1
        %s262 = smul.addr %s261, 16
        %s263 = scalar_lea.vmem [#allocation1], %s262
        %s264 = sadd.s32 %s17, %s16
        %s265 = smul.addr %s15, 2
        %s266 = sadd.s32 %s264, %s265
        %s267 = smul.addr %s14, 2
        %s268 = sadd.s32 %s266, %s267
        %s269 = smul.addr %s268, 8
        %s270 = scalar_lea.vmem %s1, %s269
        // Predicated region
        $region55: #{custom-call.13} parent=53 // pred_check
          _
        $region56: #{custom-call.13} parent=53 // pred_check_branch
          %272 = sbr.rel (0) target = $region58
        $region57: #{custom-call.13} parent=53 // pred_region
          // Predicated region
          $region59: #{custom-call.13} parent=57 // pred_check
            _
          $region60: #{custom-call.13} parent=57 // pred_check_branch
            %274 = sbr.rel (0) target = $region62
          $region61: #{custom-call.13} parent=57 // pred_region
            // Predicated region
            $region74: #{custom-call.13} parent=61 // pred_check
              _
            $region75: #{custom-call.13} parent=61 // pred_check_branch
              %291 = sbr.rel (0) target = $region77
            $region76: #{custom-call.13} parent=61 // pred_region
              loop: start=0, step=1, limit=1
              $region78: #{custom-call.13} parent=76 // loop_pre_header
                _
              $region79: #{custom-call.13} parent=76 // loop_header
                %s293 = sphi 0, %s297
                %p294 = scmp.ge.s32.totalorder %s293, 1
                %s298 = sphi %s263, %s263
                %s299 = sphi %s270, %s270
              $region80: #{custom-call.13} parent=76 // loop_header_branch
                %296 = sbr.rel (%p294) target = $region84
              $region81: #{custom-call.13} parent=76 // loop_body
                %v300 = vld [vmem:[%s298] sm:$0xff]
                %301 = vst [vmem:[%s299] sm:$0xff] %v300
                %v302 = vld [vmem:[%s298 + $0x8] sm:$0xff]
                %303 = vst [vmem:[%s299 + $0x8] sm:$0xff] %v302
              $region82: #{custom-call.13} parent=76 // loop_footer
                %s297 = sadd.s32 1, %s293
              $region83: #{custom-call.13} parent=76 // loop_footer_branch
                %292 = sbr.rel target = $region79
              $region84: #{custom-call.13} parent=76 // loop_exit
                _
            $region77: #{custom-call.13} parent=61 // pred_fallthru
              _
            // Predicated region
            $region85: #{custom-call.13} parent=61 // pred_check
              _
            $region86: #{custom-call.13} parent=61 // pred_check_branch
              %305 = sbr.rel target = $region88
            $region87: #{custom-call.13} parent=61 // pred_region
              _
            $region88: #{custom-call.13} parent=61 // pred_fallthru
              _
          $region62: #{custom-call.13} parent=57 // pred_fallthru
            _
          // Predicated region
          $region63: #{custom-call.13} parent=57 // pred_check
            _
          $region64: #{custom-call.13} parent=57 // pred_check_branch
            %276 = sbr.rel target = $region66
          $region65: #{custom-call.13} parent=57 // pred_region
            loop: start=0, step=1, limit=1
            $region67: #{custom-call.13} parent=65 // loop_pre_header
              _
            $region68: #{custom-call.13} parent=65 // loop_header
              %s279 = sphi 0, %s283
              %p280 = scmp.ge.s32.totalorder %s279, 1
              %s284 = sphi %s263, %s263
              %s285 = sphi %s270, %s270
            $region69: #{custom-call.13} parent=65 // loop_header_branch
              %282 = sbr.rel (%p280) target = $region73
            $region70: #{custom-call.13} parent=65 // loop_body
              %v286 = vld [vmem:[%s284] sm:$0xff]
              %287 = vst [vmem:[%s285] sm:$0xff] %v286
              %v288 = vld [vmem:[%s284 + $0x8] sm:$0xff]
              %289 = vst [vmem:[%s285 + $0x8] sm:$0xff] %v288
            $region71: #{custom-call.13} parent=65 // loop_footer
              %s283 = sadd.s32 1, %s279
            $region72: #{custom-call.13} parent=65 // loop_footer_branch
              %278 = sbr.rel target = $region68
            $region73: #{custom-call.13} parent=65 // loop_exit
              _
          $region66: #{custom-call.13} parent=57 // pred_fallthru
            _
        $region58: #{custom-call.13} parent=53 // pred_fallthru
          _
        %306 = vnop
      $region54: #{custom-call.13} parent=5 // pred_fallthru
        _
      %p307 = scmp.le.s32.totalorder 2, %s3
      // Predicated region
      $region89: #{custom-call.13} parent=5 // pred_check
        %p308 = pneg %p307
      $region90: #{custom-call.13} parent=5 // pred_check_branch
        %310 = sbr.rel (%p308) target = $region92
      $region91: #{custom-call.13} parent=5 // pred_region
        %s311 = ssub.s32 %s3, 2
        %s312 = sand.u32 %s9, 1
        %s313 = sand.u32 %s9, 1
        %s314 = smul.addr %s313, 16
        %s315 = scalar_lea.vmem [#allocation1], %s314
      $region92: #{custom-call.13} parent=5 // pred_fallthru
        _
    $region6: #{custom-call.13} parent=1 // loop_footer
      %s7 = sadd.s32 1, %s3
    $region7: #{custom-call.13} parent=1 // loop_footer_branch
      %2 = sbr.rel target = $region3
    $region8: #{custom-call.13} parent=1 // loop_exit
      _

// kernel: ridge_regressor_forward.1
$region0: #{ridge_regressor_forward.1}
  #allocation0 [shape = 'u32[]', space=smem, size = 0x4, offset = 0x4, fixed_abs, tag = 'smem constant byte address 0x4 - core index']
  #allocation1 [shape = 'u32[144,128]{1,0:T(1,128)}', space=vmem, size = 0x12000, scoped, tag = 'internal scratch']
  #allocation2 [shape = 's32[1]{0}', space=sflag, size = 0x4, scoped, tag = 'scoped memory for ridge_regressor_forward.1']
  #allocation3 [shape = 'f32[1]{0:T(128)S(6)}', space=smem, size = 0x200, scoped, tag = 'prefetched SMEM operand 0']
  %s0 = inlined_call_operand.<no memory space> [shape: f32[1], index: 0, kind: input, shape index: {}]
  %s1 = inlined_call_operand.vmem [shape: f32[2,8,16], index: 1, kind: input, shape index: {}]
  %s2 = inlined_call_operand.vmem [shape: f32[2,4,16], index: 2, kind: input, shape index: {}]
  %s3 = inlined_call_operand.vmem [shape: f32[2,9,13], index: 3, kind: output, shape index: {}]
  %s4 = sld [smem:[#allocation0]]
  $region45: #{ridge_regressor_forward.1} parent=0
    _
  %s6 = ssub.s32 1, %s4
  %s7 = scalar_select 0, %s6, %s4
  %8 = sst [smem:[#allocation3]] %s0
  loop: start=0, step=1, limit=4
  $region2: #{ridge_regressor_forward.1} parent=0 // loop_pre_header
    _
  $region3: #{ridge_regressor_forward.1} parent=0 // loop_header
    %s10 = sphi 0, %s14
    %p11 = scmp.ge.s32.totalorder %s10, 4
    %s17 = sphi 0, %s29
    %s18 = sphi 0, %s25
    %s19 = sphi 0, %s17
    %s20 = sphi 0, %s18
    %s21 = sphi 0, %s19
    %s22 = sphi 0, %s20
    %s34 = sphi 0, %s36
    %s37 = sphi 0, %s34
    %s38 = sphi 0, %s37
    %s54 = sphi 0, %s38
    %s62 = sphi 0, %s64
    %s65 = sphi 0, %s62
    %s66 = sphi 0, %s65
    %s82 = sphi 0, %s66
    %s88 = sphi 0, %s90
    %s91 = sphi 0, %s88
    %s92 = sphi 0, %s91
    %s108 = sphi 0, %s92
  $region4: #{ridge_regressor_forward.1} parent=0 // loop_header_branch
    %13 = sbr.rel (%p11) target = $region8
  $region5: #{ridge_regressor_forward.1} parent=0 // loop_body
    %s15 = ssub.s32 %s10, 1
    %s16 = ssub.s32 %s10, 2
    %s23 = sadd.s32 1, %s18
    %p24 = scmp.ge.s32.totalorder %s23, 1
    %s25 = scalar_select %p24, 0, %s23
    %s26 = sadd.s32 1, %s17
    %s27 = scalar_select %p24, %s26, %s17
    %p28 = scmp.ge.s32.totalorder %s27, 2
    %s29 = scalar_select %p28, 0, %s27
    %s30 = ssub.s32 %s17, %s29
    %s31 = ssub.s32 %s18, %s25
    %s32 = sor.u32 %s30, %s31
    %p33 = scmp.eq.s32.totalorder %s32, 0
    %s35 = sadd.s32 %s34, 1
    %s36 = scalar_select %p33, %s34, %s35
    %p39 = pneg %p33
    %p40 = scmp.eq.s32.totalorder %s10, 1
    %p41 = por %p39, %p40
    %p42 = scmp.ne.s32.totalorder %s34, %s37
    %p43 = scmp.eq.s32.totalorder %s10, 0
    %p44 = por %p42, %p43
    %p45 = scmp.ne.s32.totalorder %s34, %s37
    %p46 = scmp.eq.s32.totalorder %s15, 1
    %p47 = por %p45, %p46
    %p48 = scmp.ne.s32.totalorder %s37, %s38
    %p49 = scmp.eq.s32.totalorder %s15, 0
    %p50 = por %p48, %p49
    %p51 = scmp.ne.s32.totalorder %s37, %s38
    %p52 = scmp.eq.s32.totalorder %s16, 1
    %p53 = por %p51, %p52
    %p55 = scmp.ne.s32.totalorder %s38, %s54
    %p56 = scmp.eq.s32.totalorder %s16, 0
    %p57 = por %p55, %p56
    %s58 = ssub.s32 %s17, %s29
    %s59 = ssub.s32 %s18, %s25
    %s60 = sor.u32 %s58, %s59
    %p61 = scmp.eq.s32.totalorder %s60, 0
    %s63 = sadd.s32 %s62, 1
    %s64 = scalar_select %p61, %s62, %s63
    %p67 = pneg %p61
    %p68 = scmp.eq.s32.totalorder %s10, 1
    %p69 = por %p67, %p68
    %p70 = scmp.ne.s32.totalorder %s62, %s65
    %p71 = scmp.eq.s32.totalorder %s10, 0
    %p72 = por %p70, %p71
    %p73 = scmp.ne.s32.totalorder %s62, %s65
    %p74 = scmp.eq.s32.totalorder %s15, 1
    %p75 = por %p73, %p74
    %p76 = scmp.ne.s32.totalorder %s65, %s66
    %p77 = scmp.eq.s32.totalorder %s15, 0
    %p78 = por %p76, %p77
    %p79 = scmp.ne.s32.totalorder %s65, %s66
    %p80 = scmp.eq.s32.totalorder %s16, 1
    %p81 = por %p79, %p80
    %p83 = scmp.ne.s32.totalorder %s66, %s82
    %p84 = scmp.eq.s32.totalorder %s16, 0
    %p85 = por %p83, %p84
    %s86 = ssub.s32 %s17, %s29
    %p87 = scmp.eq.s32.totalorder %s86, 0
    %s89 = sadd.s32 %s88, 1
    %s90 = scalar_select %p87, %s88, %s89
    %p93 = pneg %p87
    %p94 = scmp.eq.s32.totalorder %s10, 1
    %p95 = por %p93, %p94
    %p96 = scmp.ne.s32.totalorder %s88, %s91
    %p97 = scmp.eq.s32.totalorder %s10, 0
    %p98 = por %p96, %p97
    %p99 = scmp.ne.s32.totalorder %s88, %s91
    %p100 = scmp.eq.s32.totalorder %s15, 1
    %p101 = por %p99, %p100
    %p102 = scmp.ne.s32.totalorder %s91, %s92
    %p103 = scmp.eq.s32.totalorder %s15, 0
    %p104 = por %p102, %p103
    %p105 = scmp.ne.s32.totalorder %s91, %s92
    %p106 = scmp.eq.s32.totalorder %s16, 1
    %p107 = por %p105, %p106
    %p109 = scmp.ne.s32.totalorder %s92, %s108
    %p110 = scmp.eq.s32.totalorder %s16, 0
    %p111 = por %p109, %p110
    %p112 = scmp.le.s32.totalorder 1, %s10
    %p113 = scmp.lt.s32.totalorder %s10, 3
    %p114 = pnand %p112, %p113
    %p115 = pneg %p114
    // Predicated region
    $region9: #{ridge_regressor_forward.1} parent=5 // pred_check
      _
    $region10: #{ridge_regressor_forward.1} parent=5 // pred_check_branch
      %117 = sbr.rel (%p114) target = $region12
    $region11: #{ridge_regressor_forward.1} parent=5 // pred_region
      %s118 = ssub.s32 %s10, 1
    $region12: #{ridge_regressor_forward.1} parent=5 // pred_fallthru
      _
    %p119 = scmp.lt.s32.totalorder %s10, 2
    // Predicated region
    $region13: #{ridge_regressor_forward.1} parent=5 // pred_check
      %p120 = pneg %p119
    $region14: #{ridge_regressor_forward.1} parent=5 // pred_check_branch
      %122 = sbr.rel (%p120) target = $region16
    $region15: #{ridge_regressor_forward.1} parent=5 // pred_region
      // Predicated region
      $region17: #{ridge_regressor_forward.1} parent=15 // pred_check
        %p123 = pneg %p44
      $region18: #{ridge_regressor_forward.1} parent=15 // pred_check_branch
        %125 = sbr.rel (%p123) target = $region20
      $region19: #{ridge_regressor_forward.1} parent=15 // pred_region
        %p126 = scmp.lt.s32.totalorder %s17, 1
        %s127 = scalar_select %p126, %s17, 1
        %p128 = scmp.lt.s32.totalorder %s18, 0
        %s129 = scalar_select %p128, %s18, 0
        %s130 = sadd.s32 %s129, %s127
        %s131 = smul.addr %s130, 8
        %s132 = scalar_lea.vmem %s1, %s131
      $region20: #{ridge_regressor_forward.1} parent=15 // pred_fallthru
        _
      // Predicated region
      $region21: #{ridge_regressor_forward.1} parent=15 // pred_check
        %p133 = pneg %p72
      $region22: #{ridge_regressor_forward.1} parent=15 // pred_check_branch
        %135 = sbr.rel (%p133) target = $region24
      $region23: #{ridge_regressor_forward.1} parent=15 // pred_region
        %p136 = scmp.lt.s32.totalorder %s17, 1
        %s137 = scalar_select %p136, %s17, 1
        %p138 = scmp.lt.s32.totalorder %s18, 0
        %s139 = scalar_select %p138, %s18, 0
        %s140 = sadd.s32 %s139, %s137
        %s141 = smul.addr %s140, 4
        %s142 = scalar_lea.vmem %s2, %s141
      $region24: #{ridge_regressor_forward.1} parent=15 // pred_fallthru
        _
    $region16: #{ridge_regressor_forward.1} parent=5 // pred_fallthru
      _
    %p143 = scmp.le.s32.totalorder 1, %s10
    %p144 = scmp.lt.s32.totalorder %s10, 3
    %p145 = pnand %p143, %p144
    %p146 = pneg %p145
    // Predicated region
    $region25: #{ridge_regressor_forward.1} parent=5 // pred_check
      _
    $region26: #{ridge_regressor_forward.1} parent=5 // pred_check_branch
      %148 = sbr.rel (%p145) target = $region28
    $region27: #{ridge_regressor_forward.1} parent=5 // pred_region
      %s149 = ssub.s32 %s10, 1
      %p150 = scmp.lt.s32.totalorder %s19, 1
      %s151 = scalar_select %p150, %s19, 1
      %p152 = scmp.lt.s32.totalorder %s20, 0
      %s153 = scalar_select %p152, %s20, 0
      %s154 = sadd.s32 %s153, %s151
      %s155 = smul.addr %s154, 8
      %s156 = scalar_lea.vmem %s1, %s155
      %p157 = pneg %p50
      %p158 = pneg %p47
      %p159 = scmp.lt.s32.totalorder %s19, 1
      %s160 = scalar_select %p159, %s19, 1
      %p161 = scmp.lt.s32.totalorder %s20, 0
      %s162 = scalar_select %p161, %s20, 0
      %s163 = sadd.s32 %s162, %s160
      %s164 = smul.addr %s163, 4
      %s165 = scalar_lea.vmem %s2, %s164
      %p166 = pneg %p78
      %p167 = pneg %p75
      %p168 = pneg %p104
      %p169 = pneg %p101
      %p170 = scmp.lt.s32.totalorder %s19, 1
      %s171 = scalar_select %p170, %s19, 1
      %s172 = smul.addr %s171, 2
      %s173 = smul.addr %s172, 8
      %s174 = scalar_lea.vmem %s3, %s173
      %p175 = scmp.lt.s32.totalorder %s19, 1
      %s176 = scalar_select %p175, %s19, 1
      %p177 = scmp.lt.s32.totalorder %s20, 0
      %s178 = scalar_select %p177, %s20, 0
      %s179 = sadd.s32 %s178, %s176
      %s180 = smul.addr %s179, 8
      %s181 = scalar_lea.vmem %s1, %s180
      %p182 = scmp.lt.s32.totalorder %s19, 1
      %s183 = scalar_select %p182, %s19, 1
      %p184 = scmp.lt.s32.totalorder %s20, 0
      %s185 = scalar_select %p184, %s20, 0
      %s186 = sadd.s32 %s185, %s183
      %s187 = smul.addr %s186, 4
      %s188 = scalar_lea.vmem %s2, %s187
      %p189 = scmp.lt.s32.totalorder %s19, 1
      %s190 = scalar_select %p189, %s19, 1
      %s191 = smul.addr %s190, 2
      %s192 = smul.addr %s191, 8
      %s193 = scalar_lea.vmem %s3, %s192
      %v194 = vld [vmem:[%s181] sm:$0xff]
      %v195 = vld [vmem:[%s188] sm:$0xf]
      %v197 = vrot.slane %v195, 7
      %vm199 = vcmask 1040384
      %v200 = vsel %vm199, 1.0, %v197
      %vm201 = vcmask 130048
      %v203 = vsel %vm201, %v194, 0
      %v206 = vsel %vm201, 1.0, 0
      %v209 = vsel %vm201, %v200, 0
      %211 = vmatprep.subr.mxu0 0.0
      %212 = vmatpush1.xpose.msra.mxu0 %v203
      %213 = vmatprep.subr.mxu0 0.0
      %214 = vmatpush1.xpose.msra.mxu0 %v209
      %215 = vmatprep.subr.mxu0 0.0
      %216 = vmatpush1.xpose.msra.mxu0 0.0
      %217 = vmatprep.subr.mxu0 0.0
      %218 = vmatpush1.xpose.msra.mxu0 0.0
      %219 = vmatprep.subr.mxu0 0.0
      %220 = vmatpush1.xpose.msra.mxu0 0.0
      %221 = vmatprep.subr.mxu0 0.0
      %222 = vmatpush1.xpose.msra.mxu0 0.0
      %223 = vmatprep.subr.mxu0 0.0
      %224 = vmatpush1.xpose.msra.mxu0 0.0
      %225 = vmatprep.subr.mxu0 0.0
      %226 = vmatpush1.xpose.msra.mxu0 0.0
      %227 = vmatprep.subr.mxu0 0.0
      %228 = vmatpush1.xpose.msra.mxu0 0.0
      %229 = vmatprep.subr.mxu0 0.0
      %230 = vmatpush1.xpose.msra.mxu0 0.0
      %231 = vmatprep.subr.mxu0 0.0
      %232 = vmatpush1.xpose.msra.mxu0 0.0
      %233 = vmatprep.subr.mxu0 0.0
      %234 = vmatpush1.xpose.msra.mxu0 0.0
      %235 = vmatprep.subr.mxu0 0.0
      %236 = vmatpush1.xpose.msra.mxu0 0.0
      %237 = vmatprep.subr.mxu0 0.0
      %238 = vmatpush1.xpose.msra.mxu0 0.0
      %239 = vmatprep.subr.mxu0 0.0
      %240 = vmatpush1.xpose.msra.mxu0 0.0
      %241 = vmatprep.subr.mxu0 0.0
      %242 = vmatpush1.xpose.msra.mxu0 0.0
      %243 = vmatprep.subr.mxu0 0.0
      %244 = vmatpush1.xpose.msra.mxu0 0.0
      %245 = vmatprep.subr.mxu0 0.0
      %246 = vmatpush1.xpose.msra.mxu0 0.0
      %247 = vmatprep.subr.mxu0 0.0
      %248 = vmatpush1.xpose.msra.mxu0 0.0
      %249 = vmatprep.subr.mxu0 0.0
      %250 = vmatpush1.xpose.msra.mxu0 0.0
      %251 = vmatprep.subr.mxu0 0.0
      %252 = vmatpush1.xpose.msra.mxu0 0.0
      %253 = vmatprep.subr.mxu0 0.0
      %254 = vmatpush1.xpose.msra.mxu0 0.0
      %255 = vmatprep.subr.mxu0 0.0
      %256 = vmatpush1.xpose.msra.mxu0 0.0
      %257 = vmatprep.subr.mxu0 0.0
      %258 = vmatpush1.xpose.msra.mxu0 0.0
      %259 = vmatprep.subr.mxu0 0.0
      %260 = vmatpush1.xpose.msra.mxu0 0.0
      %261 = vmatprep.subr.mxu0 0.0
      %262 = vmatpush1.xpose.msra.mxu0 0.0
      %263 = vmatprep.subr.mxu0 0.0
      %264 = vmatpush1.xpose.msra.mxu0 0.0
      %265 = vmatprep.subr.mxu0 0.0
      %266 = vmatpush1.xpose.msra.mxu0 0.0
      %267 = vmatprep.subr.mxu0 0.0
      %268 = vmatpush1.xpose.msra.mxu0 0.0
      %269 = vmatprep.subr.mxu0 0.0
      %270 = vmatpush1.xpose.msra.mxu0 0.0
      %271 = vmatprep.subr.mxu0 0.0
      %272 = vmatpush1.xpose.msra.mxu0 0.0
      %273 = vmatprep.subr.mxu0 0.0
      %274 = vmatpush1.xpose.msra.mxu0 0.0
      %275 = vmatprep.mubr.f32.mxu0 0.0
      %276 = vmatmul.mubr.f32.gmra.mrb[0].mxu0 %v203
      %v277 = vpop.f32.mrb[0].mxu0
      %v278 = vadd.f32 0.0, %v277
      %v279 = vpop.f32.mrb[0].mxu0
      %280 = vmatprep.mubr.f32.mxu0 0.0
      %281 = vmatmul.mubr.f32.gmra.mrb[0].mxu0 %v206
      %v282 = vpop.f32.mrb[0].mxu0
      %v283 = vadd.f32 0.0, %v282
      %v284 = vpop.f32.mrb[0].mxu0
      %285 = vdwg.mxu0
      %p286 = scmp.eq.s32.totalorder %s20, 0
      // Predicated region
      $region29: #{ridge_regressor_forward.1} parent=27 // pred_check
        %p287 = pneg %p286
      $region30: #{ridge_regressor_forward.1} parent=27 // pred_check_branch
        %289 = sbr.rel (%p287) target = $region32
      $region31: #{ridge_regressor_forward.1} parent=27 // pred_region
        %s290 = sld [smem:[#allocation3]]
        %v291 = vlaneseq
        %v292 = vshrl.u32 %v291, 7
        %v293 = vadd.s32 %v292, 8
        %v294 = vlaneseq
        %v295 = vand.u32 %v294, 127
        %vm296 = vcmp.eq.s32.totalorder %v292, %v295
        %vm297 = vcmp.eq.s32.totalorder %v293, %v295
        %v298 = vsel %vm296, 1, 0
        %v299 = vsel %vm297, 1, 0
        %v300 = vcvt.s32.f32 %v298
        %v301 = vcvt.s32.f32 %v299
        %v302 = vstv %s290
        %v303 = vmul.f32 %v300, %v302
        %v304 = vmul.f32 %v301, %v302
        %vm305 = vcmask 105472
        %306 = vst.msk [vmem:[%s193] sm:$0xff] %vm305, %v303
        %vm307 = vcmask 98304
        %308 = vst.msk [vmem:[%s193 + $0x8] sm:$0x1] %vm307, %v304
      $region32: #{ridge_regressor_forward.1} parent=27 // pred_fallthru
        _
      %v309 = vld [vmem:[%s193] sm:$0xff]
      %v310 = vld [vmem:[%s193 + $0x8] sm:$0x1]
      %v311 = vadd.f32 %v309, %v278
      %v312 = vadd.f32 %v310, %v283
      %vm313 = vcmask 105472
      %314 = vst.msk [vmem:[%s193] sm:$0xff] %vm313, %v311
      %vm315 = vcmask 98304
      %316 = vst.msk [vmem:[%s193 + $0x8] sm:$0x1] %vm315, %v312
      %p317 = scmp.lt.s32.totalorder %s19, 1
      %s318 = scalar_select %p317, %s19, 1
      %s319 = smul.addr %s318, 2
      %s320 = smul.addr %s319, 8
      %s321 = scalar_lea.vmem %s3, %s320
      // Predicated region
      $region33: #{ridge_regressor_forward.1} parent=27 // pred_check
        %p322 = pneg %p101
      $region34: #{ridge_regressor_forward.1} parent=27 // pred_check_branch
        %324 = sbr.rel (%p322) target = $region36
      $region35: #{ridge_regressor_forward.1} parent=27 // pred_region
        _
      $region36: #{ridge_regressor_forward.1} parent=27 // pred_fallthru
        _
    $region28: #{ridge_regressor_forward.1} parent=5 // pred_fallthru
      _
    %p325 = scmp.le.s32.totalorder 2, %s10
    // Predicated region
    $region37: #{ridge_regressor_forward.1} parent=5 // pred_check
      %p326 = pneg %p325
    $region38: #{ridge_regressor_forward.1} parent=5 // pred_check_branch
      %328 = sbr.rel (%p326) target = $region40
    $region39: #{ridge_regressor_forward.1} parent=5 // pred_region
      %s329 = ssub.s32 %s10, 2
      // Predicated region
      $region41: #{ridge_regressor_forward.1} parent=39 // pred_check
        %p330 = pneg %p107
      $region42: #{ridge_regressor_forward.1} parent=39 // pred_check_branch
        %332 = sbr.rel (%p330) target = $region44
      $region43: #{ridge_regressor_forward.1} parent=39 // pred_region
        %p333 = scmp.lt.s32.totalorder %s21, 1
        %s334 = scalar_select %p333, %s21, 1
        %s335 = smul.addr %s334, 2
        %s336 = smul.addr %s335, 8
        %s337 = scalar_lea.vmem %s3, %s336
      $region44: #{ridge_regressor_forward.1} parent=39 // pred_fallthru
        _
    $region40: #{ridge_regressor_forward.1} parent=5 // pred_fallthru
      _
  $region6: #{ridge_regressor_forward.1} parent=0 // loop_footer
    %s14 = sadd.s32 1, %s10
  $region7: #{ridge_regressor_forward.1} parent=0 // loop_footer_branch
    %9 = sbr.rel target = $region3
  $region8: #{ridge_regressor_forward.1} parent=0 // loop_exit
    _

// kernel: custom-call.12
$region0: #{custom-call.12}
  %s0 = inlined_call_operand.vmem [shape: f32[2,1,9,9], index: 0, kind: input, shape index: {}]
  %s1 = inlined_call_operand.vmem [shape: f32[2,1,9,9], index: 1, kind: output, shape index: {}]
  $region1: #{custom-call.12} parent=0
    #allocation0 [shape = 'u8[16384]{0}', space=vmem, size = 0x4000, scoped, tag = 'operand span for operand 0']
    #allocation1 [shape = 'u8[16384]{0}', space=vmem, size = 0x4000, scoped, tag = 'operand span for operand 1']
    loop: start=0, step=1, limit=4
    $region2: #{custom-call.12} parent=1 // loop_pre_header
      _
    $region3: #{custom-call.12} parent=1 // loop_header
      %s3 = sphi 0, %s7
      %p4 = scmp.ge.s32.totalorder %s3, 4
      %s10 = sphi 0, %s36
      %s11 = sphi 0, %s32
      %s12 = sphi 0, %s28
      %s13 = sphi 0, %s24
      %s14 = sphi 0, %s10
      %s15 = sphi 0, %s11
      %s16 = sphi 0, %s12
      %s17 = sphi 0, %s13
      %s18 = sphi 0, %s14
      %s19 = sphi 0, %s15
      %s20 = sphi 0, %s16
      %s21 = sphi 0, %s17
    $region4: #{custom-call.12} parent=1 // loop_header_branch
      %6 = sbr.rel (%p4) target = $region8
    $region5: #{custom-call.12} parent=1 // loop_body
      %s8 = ssub.s32 %s3, 1
      %s9 = ssub.s32 %s3, 2
      %s22 = sadd.s32 1, %s13
      %p23 = scmp.ge.s32.totalorder %s22, 1
      %s24 = scalar_select %p23, 0, %s22
      %s25 = sadd.s32 1, %s12
      %s26 = scalar_select %p23, %s25, %s12
      %p27 = scmp.ge.s32.totalorder %s26, 1
      %s28 = scalar_select %p27, 0, %s26
      %s29 = sadd.s32 1, %s11
      %s30 = scalar_select %p27, %s29, %s11
      %p31 = scmp.ge.s32.totalorder %s30, 1
      %s32 = scalar_select %p31, 0, %s30
      %s33 = sadd.s32 1, %s10
      %s34 = scalar_select %p31, %s33, %s10
      %p35 = scmp.ge.s32.totalorder %s34, 2
      %s36 = scalar_select %p35, 0, %s34
      %p37 = scmp.le.s32.totalorder 1, %s3
      %p38 = scmp.lt.s32.totalorder %s3, 3
      %p39 = pnand %p37, %p38
      %p40 = pneg %p39
      // Predicated region
      $region9: #{custom-call.12} parent=5 // pred_check
        _
      $region10: #{custom-call.12} parent=5 // pred_check_branch
        %42 = sbr.rel (%p39) target = $region12
      $region11: #{custom-call.12} parent=5 // pred_region
        %s43 = ssub.s32 %s3, 1
      $region12: #{custom-call.12} parent=5 // pred_fallthru
        _
      %p44 = scmp.lt.s32.totalorder %s3, 2
      // Predicated region
      $region13: #{custom-call.12} parent=5 // pred_check
        %p45 = pneg %p44
      $region14: #{custom-call.12} parent=5 // pred_check_branch
        %47 = sbr.rel (%p45) target = $region16
      $region15: #{custom-call.12} parent=5 // pred_region
        %s48 = sand.u32 %s3, 1
        %s49 = sand.u32 %s3, 1
        %s50 = smul.addr %s49, 16
        %s51 = scalar_lea.vmem [#allocation0], %s50
        %s52 = sadd.s32 %s13, %s12
        %s53 = smul.addr %s11, 2
        %s54 = sadd.s32 %s52, %s53
        %s55 = smul.addr %s10, 2
        %s56 = sadd.s32 %s54, %s55
        %s57 = smul.addr %s56, 8
        %s58 = scalar_lea.vmem %s0, %s57
        // Predicated region
        $region17: #{custom-call.12} parent=15 // pred_check
          _
        $region18: #{custom-call.12} parent=15 // pred_check_branch
          %60 = sbr.rel (0) target = $region20
        $region19: #{custom-call.12} parent=15 // pred_region
          // Predicated region
          $region21: #{custom-call.12} parent=19 // pred_check
            _
          $region22: #{custom-call.12} parent=19 // pred_check_branch
            %62 = sbr.rel (0) target = $region24
          $region23: #{custom-call.12} parent=19 // pred_region
            // Predicated region
            $region36: #{custom-call.12} parent=23 // pred_check
              _
            $region37: #{custom-call.12} parent=23 // pred_check_branch
              %79 = sbr.rel (0) target = $region39
            $region38: #{custom-call.12} parent=23 // pred_region
              loop: start=0, step=1, limit=1
              $region40: #{custom-call.12} parent=38 // loop_pre_header
                _
              $region41: #{custom-call.12} parent=38 // loop_header
                %s81 = sphi 0, %s85
                %p82 = scmp.ge.s32.totalorder %s81, 1
                %s86 = sphi %s58, %s58
                %s87 = sphi %s51, %s51
              $region42: #{custom-call.12} parent=38 // loop_header_branch
                %84 = sbr.rel (%p82) target = $region46
              $region43: #{custom-call.12} parent=38 // loop_body
                %v88 = vld [vmem:[%s86] sm:$0xff]
                %89 = vst [vmem:[%s87] sm:$0xff] %v88
                %v90 = vld [vmem:[%s86 + $0x8] sm:$0xff]
                %91 = vst [vmem:[%s87 + $0x8] sm:$0xff] %v90
              $region44: #{custom-call.12} parent=38 // loop_footer
                %s85 = sadd.s32 1, %s81
              $region45: #{custom-call.12} parent=38 // loop_footer_branch
                %80 = sbr.rel target = $region41
              $region46: #{custom-call.12} parent=38 // loop_exit
                _
            $region39: #{custom-call.12} parent=23 // pred_fallthru
              _
            // Predicated region
            $region47: #{custom-call.12} parent=23 // pred_check
              _
            $region48: #{custom-call.12} parent=23 // pred_check_branch
              %93 = sbr.rel target = $region50
            $region49: #{custom-call.12} parent=23 // pred_region
              _
            $region50: #{custom-call.12} parent=23 // pred_fallthru
              _
          $region24: #{custom-call.12} parent=19 // pred_fallthru
            _
          // Predicated region
          $region25: #{custom-call.12} parent=19 // pred_check
            _
          $region26: #{custom-call.12} parent=19 // pred_check_branch
            %64 = sbr.rel target = $region28
          $region27: #{custom-call.12} parent=19 // pred_region
            loop: start=0, step=1, limit=1
            $region29: #{custom-call.12} parent=27 // loop_pre_header
              _
            $region30: #{custom-call.12} parent=27 // loop_header
              %s67 = sphi 0, %s71
              %p68 = scmp.ge.s32.totalorder %s67, 1
              %s72 = sphi %s58, %s58
              %s73 = sphi %s51, %s51
            $region31: #{custom-call.12} parent=27 // loop_header_branch
              %70 = sbr.rel (%p68) target = $region35
            $region32: #{custom-call.12} parent=27 // loop_body
              %v74 = vld [vmem:[%s72] sm:$0xff]
              %75 = vst [vmem:[%s73] sm:$0xff] %v74
              %v76 = vld [vmem:[%s72 + $0x8] sm:$0xff]
              %77 = vst [vmem:[%s73 + $0x8] sm:$0xff] %v76
            $region33: #{custom-call.12} parent=27 // loop_footer
              %s71 = sadd.s32 1, %s67
            $region34: #{custom-call.12} parent=27 // loop_footer_branch
              %66 = sbr.rel target = $region30
            $region35: #{custom-call.12} parent=27 // loop_exit
              _
          $region28: #{custom-call.12} parent=19 // pred_fallthru
            _
        $region20: #{custom-call.12} parent=15 // pred_fallthru
          _
        %94 = vnop
      $region16: #{custom-call.12} parent=5 // pred_fallthru
        _
      %p95 = scmp.le.s32.totalorder 1, %s3
      %p96 = scmp.lt.s32.totalorder %s3, 3
      %p97 = pnand %p95, %p96
      %p98 = pneg %p97
      // Predicated region
      $region51: #{custom-call.12} parent=5 // pred_check
        _
      $region52: #{custom-call.12} parent=5 // pred_check_branch
        %100 = sbr.rel (%p97) target = $region54
      $region53: #{custom-call.12} parent=5 // pred_region
        #allocation2 [shape = 'f32[9,9]{1,0}', space=vmem, size = 0x2000, scoped, tag = 'rescaled input a']
        %s101 = ssub.s32 %s3, 1
        %s102 = sand.u32 %s8, 1
        %s103 = sand.u32 %s8, 1
        %s104 = smul.addr %s103, 16
        %s105 = scalar_lea.vmem [#allocation0], %s104
        %s106 = sand.u32 %s8, 1
        %s107 = sand.u32 %s8, 1
        %s108 = smul.addr %s107, 16
        %s109 = scalar_lea.vmem [#allocation0], %s108
        %s110 = sand.u32 %s8, 1
        %s111 = sand.u32 %s8, 1
        %s112 = smul.addr %s111, 16
        %s113 = scalar_lea.vmem [#allocation1], %s112
        %v114 = vlaneseq
        %v115 = vand.u32 %v114, 127
        %vm116 = vcmp.lt.s32.totalorder %v115, 9
        %v117 = vlaneseq
        %v118 = vshrl.u32 %v117, 7
        %vm120 = vcmp.eq.s32.totalorder %v118, %v115
        %v121 = vld [vmem:[%s105] sm:$0xff]
        %v122 = vsel %vm120, %v121, 0.0
        %123 = vadd.xlane.f32.xlu0 %v122
        %v124 = vpop.xlane.xlu0 %123
        %vm125 = vcmp.le.s32.totalorder %v118, %v115
        %vm126 = vmand %vm125, %vm116
        %v127 = vsel %vm126, %v121, 0.0
        %v128 = vrcp.pop %v124
        %v129 = vmul.f32 %v127, %v128
        %130 = vst [vmem:[#allocation2] sm:$0xff] %v129
        %s131 = scalar_lea.vmem %s105, 8 [#allocation0]
        %s132 = scalar_lea.vmem [#allocation2], 8
        %v133 = vlaneseq
        %v134 = vshrl.u32 %v133, 7
        %v135 = vadd.s32 %v134, 8
        %vm136 = vcmp.eq.s32.totalorder %v135, %v115
        %v137 = vld [vmem:[%s131] sm:$0xff]
        %v138 = vsel %vm136, %v137, 0.0
        %139 = vadd.xlane.f32.xlu0 %v138
        %v140 = vpop.xlane.xlu0 %139
        %vm141 = vcmp.le.s32.totalorder %v135, %v115
        %vm142 = vmand %vm141, %vm116
        %v143 = vsel %vm142, %v137, 0.0
        %v144 = vrcp.pop %v140
        %v145 = vmul.f32 %v143, %v144
        %146 = vst [vmem:[%s132] sm:$0xff] %v145
        %v147 = vlaneseq
        %v148 = vand.u32 %v147, 127
        %v149 = vlaneseq
        %v150 = vshrl.u32 %v149, 7
        %vm152 = vcmp.eq.s32.totalorder %v148, %v150
        %v153 = vsel %vm152, -1.0, 0.0
        %v154 = vlaneseq
        %v155 = vand.u32 %v154, 127
        %v156 = vlaneseq
        %v157 = vshrl.u32 %v156, 7
        %v158 = vadd.s32 %v157, 8
        %vm159 = vcmp.eq.s32.totalorder %v155, %v158
        %v160 = vlaneseq
        %v161 = vand.u32 %v160, 127
        %vm162 = vcmp.eq.s32.totalorder %v161, 8
        %v163 = vsel %vm162, 1.0, -1.0
        %v164 = vsel %vm159, %v163, 0.0
        %s165 = scalar_lea.vmem [#allocation2], 7
        %v166 = vld [vmem:[%s165] ss:$0 sm:$0xff]
        %v167 = vxor.u32 %v166, 2147483648
        %v168 = vlaneseq
        %v169 = vand.u32 %v168, 127
        %vm170 = vcmp.eq.s32.totalorder %v169, 7
        %v171 = vmul.f32 %v167, %v153
        %172 = vadd.xlane.f32.xlu0 %v171
        %v173 = vpop.xlane.xlu0 %172
        %v174 = vsel %vm170, %v173, %v153
        %v175 = vmul.f32 %v167, %v164
        %176 = vadd.xlane.f32.xlu0 %v175
        %v177 = vpop.xlane.xlu0 %176
        %v178 = vsel %vm170, %v177, %v164
        %s179 = scalar_lea.vmem [#allocation2], 6
        %v180 = vld [vmem:[%s179] ss:$0 sm:$0xff]
        %v181 = vxor.u32 %v180, 2147483648
        %v182 = vlaneseq
        %v183 = vand.u32 %v182, 127
        %vm184 = vcmp.eq.s32.totalorder %v183, 6
        %v185 = vmul.f32 %v181, %v174
        %186 = vadd.xlane.f32.xlu0 %v185
        %v187 = vpop.xlane.xlu0 %186
        %v188 = vsel %vm184, %v187, %v174
        %v189 = vmul.f32 %v181, %v178
        %190 = vadd.xlane.f32.xlu0 %v189
        %v191 = vpop.xlane.xlu0 %190
        %v192 = vsel %vm184, %v191, %v178
        %s193 = scalar_lea.vmem [#allocation2], 5
        %v194 = vld [vmem:[%s193] ss:$0 sm:$0xff]
        %v195 = vxor.u32 %v194, 2147483648
        %v196 = vlaneseq
        %v197 = vand.u32 %v196, 127
        %vm198 = vcmp.eq.s32.totalorder %v197, 5
        %v199 = vmul.f32 %v195, %v188
        %200 = vadd.xlane.f32.xlu0 %v199
        %v201 = vpop.xlane.xlu0 %200
        %v202 = vsel %vm198, %v201, %v188
        %v203 = vmul.f32 %v195, %v192
        %204 = vadd.xlane.f32.xlu0 %v203
        %v205 = vpop.xlane.xlu0 %204
        %v206 = vsel %vm198, %v205, %v192
        %s207 = scalar_lea.vmem [#allocation2], 4
        %v208 = vld [vmem:[%s207] ss:$0 sm:$0xff]
        %v209 = vxor.u32 %v208, 2147483648
        %v210 = vlaneseq
        %v211 = vand.u32 %v210, 127
        %vm212 = vcmp.eq.s32.totalorder %v211, 4
        %v213 = vmul.f32 %v209, %v202
        %214 = vadd.xlane.f32.xlu0 %v213
        %v215 = vpop.xlane.xlu0 %214
        %v216 = vsel %vm212, %v215, %v202
        %v217 = vmul.f32 %v209, %v206
        %218 = vadd.xlane.f32.xlu0 %v217
        %v219 = vpop.xlane.xlu0 %218
        %v220 = vsel %vm212, %v219, %v206
        %s221 = scalar_lea.vmem [#allocation2], 3
        %v222 = vld [vmem:[%s221] ss:$0 sm:$0xff]
        %v223 = vxor.u32 %v222, 2147483648
        %v224 = vlaneseq
        %v225 = vand.u32 %v224, 127
        %vm226 = vcmp.eq.s32.totalorder %v225, 3
        %v227 = vmul.f32 %v223, %v216
        %228 = vadd.xlane.f32.xlu0 %v227
        %v229 = vpop.xlane.xlu0 %228
        %v230 = vsel %vm226, %v229, %v216
        %v231 = vmul.f32 %v223, %v220
        %232 = vadd.xlane.f32.xlu0 %v231
        %v233 = vpop.xlane.xlu0 %232
        %v234 = vsel %vm226, %v233, %v220
        %s235 = scalar_lea.vmem [#allocation2], 2
        %v236 = vld [vmem:[%s235] ss:$0 sm:$0xff]
        %v237 = vxor.u32 %v236, 2147483648
        %v238 = vlaneseq
        %v239 = vand.u32 %v238, 127
        %vm240 = vcmp.eq.s32.totalorder %v239, 2
        %v241 = vmul.f32 %v237, %v230
        %242 = vadd.xlane.f32.xlu0 %v241
        %v243 = vpop.xlane.xlu0 %242
        %v244 = vsel %vm240, %v243, %v230
        %v245 = vmul.f32 %v237, %v234
        %246 = vadd.xlane.f32.xlu0 %v245
        %v247 = vpop.xlane.xlu0 %246
        %v248 = vsel %vm240, %v247, %v234
        %s249 = scalar_lea.vmem [#allocation2], 1
        %v250 = vld [vmem:[%s249] ss:$0 sm:$0xff]
        %v251 = vxor.u32 %v250, 2147483648
        %v252 = vlaneseq
        %v253 = vand.u32 %v252, 127
        %vm254 = vcmp.eq.s32.totalorder %v253, 1
        %v255 = vmul.f32 %v251, %v244
        %256 = vadd.xlane.f32.xlu0 %v255
        %v257 = vpop.xlane.xlu0 %256
        %v258 = vsel %vm254, %v257, %v244
        %v259 = vmul.f32 %v251, %v248
        %260 = vadd.xlane.f32.xlu0 %v259
        %v261 = vpop.xlane.xlu0 %260
        %v262 = vsel %vm254, %v261, %v248
        %v263 = vld [vmem:[#allocation2] ss:$0 sm:$0xff]
        %v264 = vxor.u32 %v263, 2147483648
        %v265 = vlaneseq
        %v266 = vand.u32 %v265, 127
        %vm267 = vcmp.eq.s32.totalorder %v266, 0
        %v268 = vmul.f32 %v264, %v258
        %269 = vadd.xlane.f32.xlu0 %v268
        %v270 = vpop.xlane.xlu0 %269
        %v271 = vsel %vm267, %v270, %v258
        %v272 = vmul.f32 %v264, %v262
        %273 = vadd.xlane.f32.xlu0 %v272
        %v274 = vpop.xlane.xlu0 %273
        %v275 = vsel %vm267, %v274, %v262
        %v276 = vrcp.pop %v124
        %v277 = vmul.f32 %v271, %v276
        %vm278 = vweird.f32 %v124
        %v279 = vsel %vm278, %v271, %v277
        %280 = vst [vmem:[%s113] sm:$0xff] %v279
        %v281 = vrcp.pop %v140
        %v282 = vmul.f32 %v275, %v281
        %vm283 = vweird.f32 %v140
        %v284 = vsel %vm283, %v275, %v282
        %s285 = scalar_lea.vmem %s113, 8 [#allocation1]
        %286 = vst [vmem:[%s285] sm:$0xff] %v284
        %s287 = sand.u32 %s8, 1
        %s288 = sand.u32 %s8, 1
        %s289 = smul.addr %s288, 16
        %s290 = scalar_lea.vmem [#allocation1], %s289
        %s291 = sadd.s32 %s17, %s16
        %s292 = smul.addr %s15, 2
        %s293 = sadd.s32 %s291, %s292
        %s294 = smul.addr %s14, 2
        %s295 = sadd.s32 %s293, %s294
        %s296 = smul.addr %s295, 8
        %s297 = scalar_lea.vmem %s1, %s296
        // Predicated region
        $region55: #{custom-call.12} parent=53 // pred_check
          _
        $region56: #{custom-call.12} parent=53 // pred_check_branch
          %299 = sbr.rel (0) target = $region58
        $region57: #{custom-call.12} parent=53 // pred_region
          // Predicated region
          $region59: #{custom-call.12} parent=57 // pred_check
            _
          $region60: #{custom-call.12} parent=57 // pred_check_branch
            %301 = sbr.rel (0) target = $region62
          $region61: #{custom-call.12} parent=57 // pred_region
            // Predicated region
            $region74: #{custom-call.12} parent=61 // pred_check
              _
            $region75: #{custom-call.12} parent=61 // pred_check_branch
              %318 = sbr.rel (0) target = $region77
            $region76: #{custom-call.12} parent=61 // pred_region
              loop: start=0, step=1, limit=1
              $region78: #{custom-call.12} parent=76 // loop_pre_header
                _
              $region79: #{custom-call.12} parent=76 // loop_header
                %s320 = sphi 0, %s324
                %p321 = scmp.ge.s32.totalorder %s320, 1
                %s325 = sphi %s290, %s290
                %s326 = sphi %s297, %s297
              $region80: #{custom-call.12} parent=76 // loop_header_branch
                %323 = sbr.rel (%p321) target = $region84
              $region81: #{custom-call.12} parent=76 // loop_body
                %v327 = vld [vmem:[%s325] sm:$0xff]
                %328 = vst [vmem:[%s326] sm:$0xff] %v327
                %v329 = vld [vmem:[%s325 + $0x8] sm:$0xff]
                %330 = vst [vmem:[%s326 + $0x8] sm:$0xff] %v329
              $region82: #{custom-call.12} parent=76 // loop_footer
                %s324 = sadd.s32 1, %s320
              $region83: #{custom-call.12} parent=76 // loop_footer_branch
                %319 = sbr.rel target = $region79
              $region84: #{custom-call.12} parent=76 // loop_exit
                _
            $region77: #{custom-call.12} parent=61 // pred_fallthru
              _
            // Predicated region
            $region85: #{custom-call.12} parent=61 // pred_check
              _
            $region86: #{custom-call.12} parent=61 // pred_check_branch
              %332 = sbr.rel target = $region88
            $region87: #{custom-call.12} parent=61 // pred_region
              _
            $region88: #{custom-call.12} parent=61 // pred_fallthru
              _
          $region62: #{custom-call.12} parent=57 // pred_fallthru
            _
          // Predicated region
          $region63: #{custom-call.12} parent=57 // pred_check
            _
          $region64: #{custom-call.12} parent=57 // pred_check_branch
            %303 = sbr.rel target = $region66
          $region65: #{custom-call.12} parent=57 // pred_region
            loop: start=0, step=1, limit=1
            $region67: #{custom-call.12} parent=65 // loop_pre_header
              _
            $region68: #{custom-call.12} parent=65 // loop_header
              %s306 = sphi 0, %s310
              %p307 = scmp.ge.s32.totalorder %s306, 1
              %s311 = sphi %s290, %s290
              %s312 = sphi %s297, %s297
            $region69: #{custom-call.12} parent=65 // loop_header_branch
              %309 = sbr.rel (%p307) target = $region73
            $region70: #{custom-call.12} parent=65 // loop_body
              %v313 = vld [vmem:[%s311] sm:$0xff]
              %314 = vst [vmem:[%s312] sm:$0xff] %v313
              %v315 = vld [vmem:[%s311 + $0x8] sm:$0xff]
              %316 = vst [vmem:[%s312 + $0x8] sm:$0xff] %v315
            $region71: #{custom-call.12} parent=65 // loop_footer
              %s310 = sadd.s32 1, %s306
            $region72: #{custom-call.12} parent=65 // loop_footer_branch
              %305 = sbr.rel target = $region68
            $region73: #{custom-call.12} parent=65 // loop_exit
              _
          $region66: #{custom-call.12} parent=57 // pred_fallthru
            _
        $region58: #{custom-call.12} parent=53 // pred_fallthru
          _
        %333 = vnop
      $region54: #{custom-call.12} parent=5 // pred_fallthru
        _
      %p334 = scmp.le.s32.totalorder 2, %s3
      // Predicated region
      $region89: #{custom-call.12} parent=5 // pred_check
        %p335 = pneg %p334
      $region90: #{custom-call.12} parent=5 // pred_check_branch
        %337 = sbr.rel (%p335) target = $region92
      $region91: #{custom-call.12} parent=5 // pred_region
        %s338 = ssub.s32 %s3, 2
        %s339 = sand.u32 %s9, 1
        %s340 = sand.u32 %s9, 1
        %s341 = smul.addr %s340, 16
        %s342 = scalar_lea.vmem [#allocation1], %s341
      $region92: #{custom-call.12} parent=5 // pred_fallthru
        _
    $region6: #{custom-call.12} parent=1 // loop_footer
      %s7 = sadd.s32 1, %s3
    $region7: #{custom-call.12} parent=1 // loop_footer_branch
      %2 = sbr.rel target = $region3
    $region8: #{custom-call.12} parent=1 // loop_exit
      _

// kernel: custom-call.15
$region0: #{custom-call.15}
  %s0 = inlined_call_operand.vmem [shape: f32[2,9,9], index: 0, kind: input, shape index: {}]
  %s1 = inlined_call_operand.vmem [shape: f32[2,9,9], index: 1, kind: output, shape index: {}]
  $region1: #{custom-call.15} parent=0
    #allocation0 [shape = 'u8[16384]{0}', space=vmem, size = 0x4000, scoped, tag = 'operand span for operand 0']
    #allocation1 [shape = 'u8[16384]{0}', space=vmem, size = 0x4000, scoped, tag = 'operand span for operand 1']
    loop: start=0, step=1, limit=4
    $region2: #{custom-call.15} parent=1 // loop_pre_header
      _
    $region3: #{custom-call.15} parent=1 // loop_header
      %s3 = sphi 0, %s7
      %p4 = scmp.ge.s32.totalorder %s3, 4
      %s10 = sphi 0, %s29
      %s11 = sphi 0, %s25
      %s12 = sphi 0, %s21
      %s13 = sphi 0, %s10
      %s14 = sphi 0, %s11
      %s15 = sphi 0, %s12
      %s16 = sphi 0, %s13
      %s17 = sphi 0, %s14
      %s18 = sphi 0, %s15
    $region4: #{custom-call.15} parent=1 // loop_header_branch
      %6 = sbr.rel (%p4) target = $region8
    $region5: #{custom-call.15} parent=1 // loop_body
      %s8 = ssub.s32 %s3, 1
      %s9 = ssub.s32 %s3, 2
      %s19 = sadd.s32 1, %s12
      %p20 = scmp.ge.s32.totalorder %s19, 1
      %s21 = scalar_select %p20, 0, %s19
      %s22 = sadd.s32 1, %s11
      %s23 = scalar_select %p20, %s22, %s11
      %p24 = scmp.ge.s32.totalorder %s23, 1
      %s25 = scalar_select %p24, 0, %s23
      %s26 = sadd.s32 1, %s10
      %s27 = scalar_select %p24, %s26, %s10
      %p28 = scmp.ge.s32.totalorder %s27, 2
      %s29 = scalar_select %p28, 0, %s27
      %p30 = scmp.le.s32.totalorder 1, %s3
      %p31 = scmp.lt.s32.totalorder %s3, 3
      %p32 = pnand %p30, %p31
      %p33 = pneg %p32
      // Predicated region
      $region9: #{custom-call.15} parent=5 // pred_check
        _
      $region10: #{custom-call.15} parent=5 // pred_check_branch
        %35 = sbr.rel (%p32) target = $region12
      $region11: #{custom-call.15} parent=5 // pred_region
        %s36 = ssub.s32 %s3, 1
      $region12: #{custom-call.15} parent=5 // pred_fallthru
        _
      %p37 = scmp.lt.s32.totalorder %s3, 2
      // Predicated region
      $region13: #{custom-call.15} parent=5 // pred_check
        %p38 = pneg %p37
      $region14: #{custom-call.15} parent=5 // pred_check_branch
        %40 = sbr.rel (%p38) target = $region16
      $region15: #{custom-call.15} parent=5 // pred_region
        %s41 = sand.u32 %s3, 1
        %s42 = sand.u32 %s3, 1
        %s43 = smul.addr %s42, 16
        %s44 = scalar_lea.vmem [#allocation0], %s43
        %s45 = sadd.s32 %s12, %s11
        %s46 = smul.addr %s10, 2
        %s47 = sadd.s32 %s45, %s46
        %s48 = smul.addr %s47, 8
        %s49 = scalar_lea.vmem %s0, %s48
        // Predicated region
        $region17: #{custom-call.15} parent=15 // pred_check
          _
        $region18: #{custom-call.15} parent=15 // pred_check_branch
          %51 = sbr.rel (0) target = $region20
        $region19: #{custom-call.15} parent=15 // pred_region
          // Predicated region
          $region21: #{custom-call.15} parent=19 // pred_check
            _
          $region22: #{custom-call.15} parent=19 // pred_check_branch
            %53 = sbr.rel (0) target = $region24
          $region23: #{custom-call.15} parent=19 // pred_region
            // Predicated region
            $region36: #{custom-call.15} parent=23 // pred_check
              _
            $region37: #{custom-call.15} parent=23 // pred_check_branch
              %70 = sbr.rel (0) target = $region39
            $region38: #{custom-call.15} parent=23 // pred_region
              loop: start=0, step=1, limit=1
              $region40: #{custom-call.15} parent=38 // loop_pre_header
                _
              $region41: #{custom-call.15} parent=38 // loop_header
                %s72 = sphi 0, %s76
                %p73 = scmp.ge.s32.totalorder %s72, 1
                %s77 = sphi %s49, %s49
                %s78 = sphi %s44, %s44
              $region42: #{custom-call.15} parent=38 // loop_header_branch
                %75 = sbr.rel (%p73) target = $region46
              $region43: #{custom-call.15} parent=38 // loop_body
                %v79 = vld [vmem:[%s77] sm:$0xff]
                %80 = vst [vmem:[%s78] sm:$0xff] %v79
                %v81 = vld [vmem:[%s77 + $0x8] sm:$0xff]
                %82 = vst [vmem:[%s78 + $0x8] sm:$0xff] %v81
              $region44: #{custom-call.15} parent=38 // loop_footer
                %s76 = sadd.s32 1, %s72
              $region45: #{custom-call.15} parent=38 // loop_footer_branch
                %71 = sbr.rel target = $region41
              $region46: #{custom-call.15} parent=38 // loop_exit
                _
            $region39: #{custom-call.15} parent=23 // pred_fallthru
              _
            // Predicated region
            $region47: #{custom-call.15} parent=23 // pred_check
              _
            $region48: #{custom-call.15} parent=23 // pred_check_branch
              %84 = sbr.rel target = $region50
            $region49: #{custom-call.15} parent=23 // pred_region
              _
            $region50: #{custom-call.15} parent=23 // pred_fallthru
              _
          $region24: #{custom-call.15} parent=19 // pred_fallthru
            _
          // Predicated region
          $region25: #{custom-call.15} parent=19 // pred_check
            _
          $region26: #{custom-call.15} parent=19 // pred_check_branch
            %55 = sbr.rel target = $region28
          $region27: #{custom-call.15} parent=19 // pred_region
            loop: start=0, step=1, limit=1
            $region29: #{custom-call.15} parent=27 // loop_pre_header
              _
            $region30: #{custom-call.15} parent=27 // loop_header
              %s58 = sphi 0, %s62
              %p59 = scmp.ge.s32.totalorder %s58, 1
              %s63 = sphi %s49, %s49
              %s64 = sphi %s44, %s44
            $region31: #{custom-call.15} parent=27 // loop_header_branch
              %61 = sbr.rel (%p59) target = $region35
            $region32: #{custom-call.15} parent=27 // loop_body
              %v65 = vld [vmem:[%s63] sm:$0xff]
              %66 = vst [vmem:[%s64] sm:$0xff] %v65
              %v67 = vld [vmem:[%s63 + $0x8] sm:$0xff]
              %68 = vst [vmem:[%s64 + $0x8] sm:$0xff] %v67
            $region33: #{custom-call.15} parent=27 // loop_footer
              %s62 = sadd.s32 1, %s58
            $region34: #{custom-call.15} parent=27 // loop_footer_branch
              %57 = sbr.rel target = $region30
            $region35: #{custom-call.15} parent=27 // loop_exit
              _
          $region28: #{custom-call.15} parent=19 // pred_fallthru
            _
        $region20: #{custom-call.15} parent=15 // pred_fallthru
          _
        %85 = vnop
      $region16: #{custom-call.15} parent=5 // pred_fallthru
        _
      %p86 = scmp.le.s32.totalorder 1, %s3
      %p87 = scmp.lt.s32.totalorder %s3, 3
      %p88 = pnand %p86, %p87
      %p89 = pneg %p88
      // Predicated region
      $region51: #{custom-call.15} parent=5 // pred_check
        _
      $region52: #{custom-call.15} parent=5 // pred_check_branch
        %91 = sbr.rel (%p88) target = $region54
      $region53: #{custom-call.15} parent=5 // pred_region
        %s92 = ssub.s32 %s3, 1
        %s93 = sand.u32 %s8, 1
        %s94 = sand.u32 %s8, 1
        %s95 = smul.addr %s94, 16
        %s96 = scalar_lea.vmem [#allocation0], %s95
        %s97 = sand.u32 %s8, 1
        %s98 = sand.u32 %s8, 1
        %s99 = smul.addr %s98, 16
        %s100 = scalar_lea.vmem [#allocation0], %s99
        %s101 = sand.u32 %s8, 1
        %s102 = sand.u32 %s8, 1
        %s103 = smul.addr %s102, 16
        %s104 = scalar_lea.vmem [#allocation1], %s103
        %105 = vst [vmem:[%s104] sm:$0xff] 0.0
        %s106 = scalar_lea.vmem %s104, 8 [#allocation1]
        %107 = vst [vmem:[%s106] sm:$0xff] 0.0
        %vm108 = vcmask 7168
        %v109 = vld [vmem:[%s104] ss:$0 sm:$0xff]
        %v110 = vld [vmem:[%s96] ss:$0 sm:$0xff]
        %v111 = vmul.f32 %v109, %v109
        %112 = vadd.xlane.f32.xlu0 %v111
        %v113 = vpop.xlane.xlu0 %112
        %v114 = vsub.f32 %v110, %v113
        %v115 = vrsqrt.pop %v114
        %v116 = vld [vmem:[%s96] sm:$0xff]
        %v117 = vld [vmem:[%s104] sm:$0xff]
        %v118 = vmul.f32 %v117, %v109
        %119 = vadd.xlane.f32.xlu0 %v118
        %v120 = vpop.xlane.xlu0 %119
        %v121 = vsub.f32 %v116, %v120
        %v122 = vmul.f32 %v121, %v115
        %v123 = vsel %vm108, %v122, 0.0
        %v124 = vadd.f32 %v117, %v123
        %125 = vst [vmem:[%s104] sm:$0xff] %v124
        %s126 = scalar_lea.vmem %s96, 8 [#allocation0]
        %v127 = vld [vmem:[%s126] sm:$0xff]
        %s128 = scalar_lea.vmem %s104, 8 [#allocation1]
        %v129 = vld [vmem:[%s128] sm:$0xff]
        %v130 = vmul.f32 %v129, %v109
        %131 = vadd.xlane.f32.xlu0 %v130
        %v132 = vpop.xlane.xlu0 %131
        %v133 = vsub.f32 %v127, %v132
        %v134 = vmul.f32 %v133, %v115
        %v135 = vsel %vm108, %v134, 0.0
        %v136 = vadd.f32 %v129, %v135
        %s137 = scalar_lea.vmem %s104, 8 [#allocation1]
        %138 = vst [vmem:[%s137] sm:$0xff] %v136
        %vm139 = vcmask 15368
        %s140 = scalar_lea.vmem %s104, 1 [#allocation1]
        %v141 = vld [vmem:[%s140] ss:$0 sm:$0xff]
        %s142 = scalar_lea.vmem %s96, 1 [#allocation0]
        %v143 = vld [vmem:[%s142] ss:$0 sm:$0xff]
        %v144 = vmul.f32 %v141, %v141
        %145 = vadd.xlane.f32.xlu0 %v144
        %v146 = vpop.xlane.xlu0 %145
        %v147 = vsub.f32 %v143, %v146
        %v148 = vrsqrt.pop %v147
        %v149 = vld [vmem:[%s96] sm:$0xff]
        %v150 = vld [vmem:[%s104] sm:$0xff]
        %v151 = vmul.f32 %v150, %v141
        %152 = vadd.xlane.f32.xlu0 %v151
        %v153 = vpop.xlane.xlu0 %152
        %v154 = vsub.f32 %v149, %v153
        %v155 = vmul.f32 %v154, %v148
        %vm156 = vcmask 1047553
        %vm157 = vmand %vm139, %vm156
        %v158 = vsel %vm157, %v155, 0.0
        %v159 = vadd.f32 %v150, %v158
        %160 = vst [vmem:[%s104] sm:$0xff] %v159
        %s161 = scalar_lea.vmem %s96, 8 [#allocation0]
        %v162 = vld [vmem:[%s161] sm:$0xff]
        %s163 = scalar_lea.vmem %s104, 8 [#allocation1]
        %v164 = vld [vmem:[%s163] sm:$0xff]
        %v165 = vmul.f32 %v164, %v141
        %166 = vadd.xlane.f32.xlu0 %v165
        %v167 = vpop.xlane.xlu0 %166
        %v168 = vsub.f32 %v162, %v167
        %v169 = vmul.f32 %v168, %v148
        %v170 = vsel %vm139, %v169, 0.0
        %v171 = vadd.f32 %v164, %v170
        %s172 = scalar_lea.vmem %s104, 8 [#allocation1]
        %173 = vst [vmem:[%s172] sm:$0xff] %v171
        %vm174 = vcmask 23568
        %s175 = scalar_lea.vmem %s104, 2 [#allocation1]
        %v176 = vld [vmem:[%s175] ss:$0 sm:$0xff]
        %s177 = scalar_lea.vmem %s96, 2 [#allocation0]
        %v178 = vld [vmem:[%s177] ss:$0 sm:$0xff]
        %v179 = vmul.f32 %v176, %v176
        %180 = vadd.xlane.f32.xlu0 %v179
        %v181 = vpop.xlane.xlu0 %180
        %v182 = vsub.f32 %v178, %v181
        %v183 = vrsqrt.pop %v182
        %v184 = vld [vmem:[%s96] sm:$0xff]
        %v185 = vld [vmem:[%s104] sm:$0xff]
        %v186 = vmul.f32 %v185, %v176
        %187 = vadd.xlane.f32.xlu0 %v186
        %v188 = vpop.xlane.xlu0 %187
        %v189 = vsub.f32 %v184, %v188
        %v190 = vmul.f32 %v189, %v183
        %vm191 = vcmask 1047554
        %vm192 = vmand %vm174, %vm191
        %v193 = vsel %vm192, %v190, 0.0
        %v194 = vadd.f32 %v185, %v193
        %195 = vst [vmem:[%s104] sm:$0xff] %v194
        %s196 = scalar_lea.vmem %s96, 8 [#allocation0]
        %v197 = vld [vmem:[%s196] sm:$0xff]
        %s198 = scalar_lea.vmem %s104, 8 [#allocation1]
        %v199 = vld [vmem:[%s198] sm:$0xff]
        %v200 = vmul.f32 %v199, %v176
        %201 = vadd.xlane.f32.xlu0 %v200
        %v202 = vpop.xlane.xlu0 %201
        %v203 = vsub.f32 %v197, %v202
        %v204 = vmul.f32 %v203, %v183
        %v205 = vsel %vm174, %v204, 0.0
        %v206 = vadd.f32 %v199, %v205
        %s207 = scalar_lea.vmem %s104, 8 [#allocation1]
        %208 = vst [vmem:[%s207] sm:$0xff] %v206
        %vm209 = vcmask 31768
        %s210 = scalar_lea.vmem %s104, 3 [#allocation1]
        %v211 = vld [vmem:[%s210] ss:$0 sm:$0xff]
        %s212 = scalar_lea.vmem %s96, 3 [#allocation0]
        %v213 = vld [vmem:[%s212] ss:$0 sm:$0xff]
        %v214 = vmul.f32 %v211, %v211
        %215 = vadd.xlane.f32.xlu0 %v214
        %v216 = vpop.xlane.xlu0 %215
        %v217 = vsub.f32 %v213, %v216
        %v218 = vrsqrt.pop %v217
        %v219 = vld [vmem:[%s96] sm:$0xff]
        %v220 = vld [vmem:[%s104] sm:$0xff]
        %v221 = vmul.f32 %v220, %v211
        %222 = vadd.xlane.f32.xlu0 %v221
        %v223 = vpop.xlane.xlu0 %222
        %v224 = vsub.f32 %v219, %v223
        %v225 = vmul.f32 %v224, %v218
        %vm226 = vcmask 1047555
        %vm227 = vmand %vm209, %vm226
        %v228 = vsel %vm227, %v225, 0.0
        %v229 = vadd.f32 %v220, %v228
        %230 = vst [vmem:[%s104] sm:$0xff] %v229
        %s231 = scalar_lea.vmem %s96, 8 [#allocation0]
        %v232 = vld [vmem:[%s231] sm:$0xff]
        %s233 = scalar_lea.vmem %s104, 8 [#allocation1]
        %v234 = vld [vmem:[%s233] sm:$0xff]
        %v235 = vmul.f32 %v234, %v211
        %236 = vadd.xlane.f32.xlu0 %v235
        %v237 = vpop.xlane.xlu0 %236
        %v238 = vsub.f32 %v232, %v237
        %v239 = vmul.f32 %v238, %v218
        %v240 = vsel %vm209, %v239, 0.0
        %v241 = vadd.f32 %v234, %v240
        %s242 = scalar_lea.vmem %s104, 8 [#allocation1]
        %243 = vst [vmem:[%s242] sm:$0xff] %v241
        %vm244 = vcmask 39968
        %s245 = scalar_lea.vmem %s104, 4 [#allocation1]
        %v246 = vld [vmem:[%s245] ss:$0 sm:$0xff]
        %s247 = scalar_lea.vmem %s96, 4 [#allocation0]
        %v248 = vld [vmem:[%s247] ss:$0 sm:$0xff]
        %v249 = vmul.f32 %v246, %v246
        %250 = vadd.xlane.f32.xlu0 %v249
        %v251 = vpop.xlane.xlu0 %250
        %v252 = vsub.f32 %v248, %v251
        %v253 = vrsqrt.pop %v252
        %v254 = vld [vmem:[%s96] sm:$0xff]
        %v255 = vld [vmem:[%s104] sm:$0xff]
        %v256 = vmul.f32 %v255, %v246
        %257 = vadd.xlane.f32.xlu0 %v256
        %v258 = vpop.xlane.xlu0 %257
        %v259 = vsub.f32 %v254, %v258
        %v260 = vmul.f32 %v259, %v253
        %vm261 = vcmask 1047556
        %vm262 = vmand %vm244, %vm261
        %v263 = vsel %vm262, %v260, 0.0
        %v264 = vadd.f32 %v255, %v263
        %265 = vst [vmem:[%s104] sm:$0xff] %v264
        %s266 = scalar_lea.vmem %s96, 8 [#allocation0]
        %v267 = vld [vmem:[%s266] sm:$0xff]
        %s268 = scalar_lea.vmem %s104, 8 [#allocation1]
        %v269 = vld [vmem:[%s268] sm:$0xff]
        %v270 = vmul.f32 %v269, %v246
        %271 = vadd.xlane.f32.xlu0 %v270
        %v272 = vpop.xlane.xlu0 %271
        %v273 = vsub.f32 %v267, %v272
        %v274 = vmul.f32 %v273, %v253
        %v275 = vsel %vm244, %v274, 0.0
        %v276 = vadd.f32 %v269, %v275
        %s277 = scalar_lea.vmem %s104, 8 [#allocation1]
        %278 = vst [vmem:[%s277] sm:$0xff] %v276
        %vm279 = vcmask 48168
        %s280 = scalar_lea.vmem %s104, 5 [#allocation1]
        %v281 = vld [vmem:[%s280] ss:$0 sm:$0xff]
        %s282 = scalar_lea.vmem %s96, 5 [#allocation0]
        %v283 = vld [vmem:[%s282] ss:$0 sm:$0xff]
        %v284 = vmul.f32 %v281, %v281
        %285 = vadd.xlane.f32.xlu0 %v284
        %v286 = vpop.xlane.xlu0 %285
        %v287 = vsub.f32 %v283, %v286
        %v288 = vrsqrt.pop %v287
        %v289 = vld [vmem:[%s96] sm:$0xff]
        %v290 = vld [vmem:[%s104] sm:$0xff]
        %v291 = vmul.f32 %v290, %v281
        %292 = vadd.xlane.f32.xlu0 %v291
        %v293 = vpop.xlane.xlu0 %292
        %v294 = vsub.f32 %v289, %v293
        %v295 = vmul.f32 %v294, %v288
        %vm296 = vcmask 1047557
        %vm297 = vmand %vm279, %vm296
        %v298 = vsel %vm297, %v295, 0.0
        %v299 = vadd.f32 %v290, %v298
        %300 = vst [vmem:[%s104] sm:$0xff] %v299
        %s301 = scalar_lea.vmem %s96, 8 [#allocation0]
        %v302 = vld [vmem:[%s301] sm:$0xff]
        %s303 = scalar_lea.vmem %s104, 8 [#allocation1]
        %v304 = vld [vmem:[%s303] sm:$0xff]
        %v305 = vmul.f32 %v304, %v281
        %306 = vadd.xlane.f32.xlu0 %v305
        %v307 = vpop.xlane.xlu0 %306
        %v308 = vsub.f32 %v302, %v307
        %v309 = vmul.f32 %v308, %v288
        %v310 = vsel %vm279, %v309, 0.0
        %v311 = vadd.f32 %v304, %v310
        %s312 = scalar_lea.vmem %s104, 8 [#allocation1]
        %313 = vst [vmem:[%s312] sm:$0xff] %v311
        %vm314 = vcmask 56368
        %s315 = scalar_lea.vmem %s104, 6 [#allocation1]
        %v316 = vld [vmem:[%s315] ss:$0 sm:$0xff]
        %s317 = scalar_lea.vmem %s96, 6 [#allocation0]
        %v318 = vld [vmem:[%s317] ss:$0 sm:$0xff]
        %v319 = vmul.f32 %v316, %v316
        %320 = vadd.xlane.f32.xlu0 %v319
        %v321 = vpop.xlane.xlu0 %320
        %v322 = vsub.f32 %v318, %v321
        %v323 = vrsqrt.pop %v322
        %v324 = vld [vmem:[%s96] sm:$0xff]
        %v325 = vld [vmem:[%s104] sm:$0xff]
        %v326 = vmul.f32 %v325, %v316
        %327 = vadd.xlane.f32.xlu0 %v326
        %v328 = vpop.xlane.xlu0 %327
        %v329 = vsub.f32 %v324, %v328
        %v330 = vmul.f32 %v329, %v323
        %vm331 = vcmask 1047558
        %vm332 = vmand %vm314, %vm331
        %v333 = vsel %vm332, %v330, 0.0
        %v334 = vadd.f32 %v325, %v333
        %335 = vst [vmem:[%s104] sm:$0xff] %v334
        %s336 = scalar_lea.vmem %s96, 8 [#allocation0]
        %v337 = vld [vmem:[%s336] sm:$0xff]
        %s338 = scalar_lea.vmem %s104, 8 [#allocation1]
        %v339 = vld [vmem:[%s338] sm:$0xff]
        %v340 = vmul.f32 %v339, %v316
        %341 = vadd.xlane.f32.xlu0 %v340
        %v342 = vpop.xlane.xlu0 %341
        %v343 = vsub.f32 %v337, %v342
        %v344 = vmul.f32 %v343, %v323
        %v345 = vsel %vm314, %v344, 0.0
        %v346 = vadd.f32 %v339, %v345
        %s347 = scalar_lea.vmem %s104, 8 [#allocation1]
        %348 = vst [vmem:[%s347] sm:$0xff] %v346
        %vm349 = vcmask 64568
        %s350 = scalar_lea.vmem %s104, 7 [#allocation1]
        %v351 = vld [vmem:[%s350] ss:$0 sm:$0xff]
        %s352 = scalar_lea.vmem %s96, 7 [#allocation0]
        %v353 = vld [vmem:[%s352] ss:$0 sm:$0xff]
        %v354 = vmul.f32 %v351, %v351
        %355 = vadd.xlane.f32.xlu0 %v354
        %v356 = vpop.xlane.xlu0 %355
        %v357 = vsub.f32 %v353, %v356
        %v358 = vrsqrt.pop %v357
        %v359 = vld [vmem:[%s96] sm:$0xff]
        %v360 = vld [vmem:[%s104] sm:$0xff]
        %v361 = vmul.f32 %v360, %v351
        %362 = vadd.xlane.f32.xlu0 %v361
        %v363 = vpop.xlane.xlu0 %362
        %v364 = vsub.f32 %v359, %v363
        %v365 = vmul.f32 %v364, %v358
        %vm366 = vcmask 1047559
        %vm367 = vmand %vm349, %vm366
        %v368 = vsel %vm367, %v365, 0.0
        %v369 = vadd.f32 %v360, %v368
        %370 = vst [vmem:[%s104] sm:$0xff] %v369
        %s371 = scalar_lea.vmem %s96, 8 [#allocation0]
        %v372 = vld [vmem:[%s371] sm:$0xff]
        %s373 = scalar_lea.vmem %s104, 8 [#allocation1]
        %v374 = vld [vmem:[%s373] sm:$0xff]
        %v375 = vmul.f32 %v374, %v351
        %376 = vadd.xlane.f32.xlu0 %v375
        %v377 = vpop.xlane.xlu0 %376
        %v378 = vsub.f32 %v372, %v377
        %v379 = vmul.f32 %v378, %v358
        %v380 = vsel %vm349, %v379, 0.0
        %v381 = vadd.f32 %v374, %v380
        %s382 = scalar_lea.vmem %s104, 8 [#allocation1]
        %383 = vst [vmem:[%s382] sm:$0xff] %v381
        %vm384 = vcmask 72768
        %s385 = scalar_lea.vmem %s104, 8 [#allocation1]
        %v386 = vld [vmem:[%s385] ss:$0 sm:$0xff]
        %s387 = scalar_lea.vmem %s96, 8 [#allocation0]
        %v388 = vld [vmem:[%s387] ss:$0 sm:$0xff]
        %v389 = vmul.f32 %v386, %v386
        %390 = vadd.xlane.f32.xlu0 %v389
        %v391 = vpop.xlane.xlu0 %390
        %v392 = vsub.f32 %v388, %v391
        %v393 = vrsqrt.pop %v392
        %s394 = scalar_lea.vmem %s96, 8 [#allocation0]
        %v395 = vld [vmem:[%s394] sm:$0xff]
        %s396 = scalar_lea.vmem %s104, 8 [#allocation1]
        %v397 = vld [vmem:[%s396] sm:$0xff]
        %v398 = vmul.f32 %v397, %v386
        %399 = vadd.xlane.f32.xlu0 %v398
        %v400 = vpop.xlane.xlu0 %399
        %v401 = vsub.f32 %v395, %v400
        %v402 = vmul.f32 %v401, %v393
        %v403 = vsel %vm384, %v402, 0.0
        %v404 = vadd.f32 %v397, %v403
        %s405 = scalar_lea.vmem %s104, 8 [#allocation1]
        %406 = vst [vmem:[%s405] sm:$0xff] %v404
        %s407 = sand.u32 %s8, 1
        %s408 = sand.u32 %s8, 1
        %s409 = smul.addr %s408, 16
        %s410 = scalar_lea.vmem [#allocation1], %s409
        %s411 = sadd.s32 %s15, %s14
        %s412 = smul.addr %s13, 2
        %s413 = sadd.s32 %s411, %s412
        %s414 = smul.addr %s413, 8
        %s415 = scalar_lea.vmem %s1, %s414
        // Predicated region
        $region55: #{custom-call.15} parent=53 // pred_check
          _
        $region56: #{custom-call.15} parent=53 // pred_check_branch
          %417 = sbr.rel (0) target = $region58
        $region57: #{custom-call.15} parent=53 // pred_region
          // Predicated region
          $region59: #{custom-call.15} parent=57 // pred_check
            _
          $region60: #{custom-call.15} parent=57 // pred_check_branch
            %419 = sbr.rel (0) target = $region62
          $region61: #{custom-call.15} parent=57 // pred_region
            // Predicated region
            $region74: #{custom-call.15} parent=61 // pred_check
              _
            $region75: #{custom-call.15} parent=61 // pred_check_branch
              %436 = sbr.rel (0) target = $region77
            $region76: #{custom-call.15} parent=61 // pred_region
              loop: start=0, step=1, limit=1
              $region78: #{custom-call.15} parent=76 // loop_pre_header
                _
              $region79: #{custom-call.15} parent=76 // loop_header
                %s438 = sphi 0, %s442
                %p439 = scmp.ge.s32.totalorder %s438, 1
                %s443 = sphi %s410, %s410
                %s444 = sphi %s415, %s415
              $region80: #{custom-call.15} parent=76 // loop_header_branch
                %441 = sbr.rel (%p439) target = $region84
              $region81: #{custom-call.15} parent=76 // loop_body
                %v445 = vld [vmem:[%s443] sm:$0xff]
                %446 = vst [vmem:[%s444] sm:$0xff] %v445
                %v447 = vld [vmem:[%s443 + $0x8] sm:$0xff]
                %448 = vst [vmem:[%s444 + $0x8] sm:$0xff] %v447
              $region82: #{custom-call.15} parent=76 // loop_footer
                %s442 = sadd.s32 1, %s438
              $region83: #{custom-call.15} parent=76 // loop_footer_branch
                %437 = sbr.rel target = $region79
              $region84: #{custom-call.15} parent=76 // loop_exit
                _
            $region77: #{custom-call.15} parent=61 // pred_fallthru
              _
            // Predicated region
            $region85: #{custom-call.15} parent=61 // pred_check
              _
            $region86: #{custom-call.15} parent=61 // pred_check_branch
              %450 = sbr.rel target = $region88
            $region87: #{custom-call.15} parent=61 // pred_region
              _
            $region88: #{custom-call.15} parent=61 // pred_fallthru
              _
          $region62: #{custom-call.15} parent=57 // pred_fallthru
            _
          // Predicated region
          $region63: #{custom-call.15} parent=57 // pred_check
            _
          $region64: #{custom-call.15} parent=57 // pred_check_branch
            %421 = sbr.rel target = $region66
          $region65: #{custom-call.15} parent=57 // pred_region
            loop: start=0, step=1, limit=1
            $region67: #{custom-call.15} parent=65 // loop_pre_header
              _
            $region68: #{custom-call.15} parent=65 // loop_header
              %s424 = sphi 0, %s428
              %p425 = scmp.ge.s32.totalorder %s424, 1
              %s429 = sphi %s410, %s410
              %s430 = sphi %s415, %s415
            $region69: #{custom-call.15} parent=65 // loop_header_branch
              %427 = sbr.rel (%p425) target = $region73
            $region70: #{custom-call.15} parent=65 // loop_body
              %v431 = vld [vmem:[%s429] sm:$0xff]
              %432 = vst [vmem:[%s430] sm:$0xff] %v431
              %v433 = vld [vmem:[%s429 + $0x8] sm:$0xff]
              %434 = vst [vmem:[%s430 + $0x8] sm:$0xff] %v433
            $region71: #{custom-call.15} parent=65 // loop_footer
              %s428 = sadd.s32 1, %s424
            $region72: #{custom-call.15} parent=65 // loop_footer_branch
              %423 = sbr.rel target = $region68
            $region73: #{custom-call.15} parent=65 // loop_exit
              _
          $region66: #{custom-call.15} parent=57 // pred_fallthru
            _
        $region58: #{custom-call.15} parent=53 // pred_fallthru
          _
        %451 = vnop
      $region54: #{custom-call.15} parent=5 // pred_fallthru
        _
      %p452 = scmp.le.s32.totalorder 2, %s3
      // Predicated region
      $region89: #{custom-call.15} parent=5 // pred_check
        %p453 = pneg %p452
      $region90: #{custom-call.15} parent=5 // pred_check_branch
        %455 = sbr.rel (%p453) target = $region92
      $region91: #{custom-call.15} parent=5 // pred_region
        %s456 = ssub.s32 %s3, 2
        %s457 = sand.u32 %s9, 1
        %s458 = sand.u32 %s9, 1
        %s459 = smul.addr %s458, 16
        %s460 = scalar_lea.vmem [#allocation1], %s459
      $region92: #{custom-call.15} parent=5 // pred_fallthru
        _
    $region6: #{custom-call.15} parent=1 // loop_footer
      %s7 = sadd.s32 1, %s3
    $region7: #{custom-call.15} parent=1 // loop_footer_branch
      %2 = sbr.rel target = $region3
    $region8: #{custom-call.15} parent=1 // loop_exit
      _

</llo_original>
